<compile_context>
chip_gen: v7x
topology: tpu7x:2x2x1
jax: 0.10.0
libtpu: 0.0.40
codegen_flags: <defaults>
</compile_context>

<pallas_src>
import math

import jax
import jax.numpy as jnp
from jax import lax
from jax.experimental import pallas as pl
from jax.experimental.pallas import tpu as pltpu

# ---- module hyperparameters (match the PyTorch source) ----
BLOCK_SIZE = 8                      # block_size
N_EMBD = 32                         # n_embd
NUM_HEADS = 4
HEAD_SIZE = N_EMBD // NUM_HEADS     # 8


def mha_kernel(x_ref, wqkv_ref, wp_ref, bp_ref, o_ref):
    """Multi-head causal self-attention for a block of B_blk batch elements.

    x_ref    : (B_blk, T, C)   input tokens
    wqkv_ref : (C, 3C)         fused [Wq | Wk | Wv], pre-transposed, heads
                               concatenated along the output axis within each block
    wp_ref   : (C, C)          output projection weight (pre-transposed)
    bp_ref   : (1, C)          output projection bias
    o_ref    : (B_blk, T, C)   output
    """
    Bb, T, C = x_ref.shape
    M = Bb * T

    # Flatten batch*seq into the matmul M dimension (leading-dim reshape only;
    # the minor dim C is preserved, so this lowers layout-free).
    x2 = x_ref[...].reshape(M, C).astype(jnp.float32)                 # (M, C)

    # Fused QKV projection: one MXU matmul instead of three.
    qkv = jnp.dot(x2, wqkv_ref[...], preferred_element_type=jnp.float32)  # (M, 3C)

    # NOTE: the PyTorch Head scales by C ** -0.5 (embedding dim), not head_size.
    scale = C ** -0.5
    q = (qkv[:, 0:C] * scale).reshape(Bb, T, C)                        # (Bb, T, C)
    k = qkv[:, C:2 * C].reshape(Bb, T, C)
    v = qkv[:, 2 * C:3 * C].reshape(Bb, T, C)

    # Hoisted additive causal bias (0 on/below the diagonal, -1e30 above).
    row = lax.broadcasted_iota(jnp.int32, (1, T, T), 1)
    col = lax.broadcasted_iota(jnp.int32, (1, T, T), 2)
    causal_bias = jnp.where(col <= row, 0.0, -1e30).astype(jnp.float32)  # (1, T, T)

    # Lane index over the feature dimension, for the per-head column masks.
    lane = lax.broadcasted_iota(jnp.int32, (1, 1, C), 2)               # (1, 1, C)

    # Head outputs have disjoint column support (v is masked per head), so the
    # "concat over heads" of the PyTorch module is just a sum here.
    acc = jnp.zeros((Bb, T, C), jnp.float32)
    for h in range(NUM_HEADS):                 # small, fully unrolled at trace time
        lo = h * HEAD_SIZE
        hm = ((lane >= lo) & (lane < lo + HEAD_SIZE)).astype(jnp.float32)  # (1,1,C)
        kh = k * hm                                                    # head-h cols of k
        vh = v * hm                                                    # head-h cols of v

        # Scores over the full C width; columns outside head h contribute 0
        # because kh is zero there.  Single batch dim -> clean MXU lowering.
        s = jnp.einsum('btc,bsc->bts', q, kh,
                       preferred_element_type=jnp.float32)             # (Bb, T, T)
        s = s + causal_bias

        # Numerically-stable softmax; approx reciprocal (EUP slot) + 1 NR step.
        m = jnp.max(s, axis=-1, keepdims=True)                         # (Bb, T, 1)
        e = jnp.exp(s - m)                                             # (Bb, T, T)
        denom = jnp.sum(e, axis=-1, keepdims=True)                     # (Bb, T, 1)
        r = pl.reciprocal(denom, approx=True)
        r = r * (2.0 - denom * r)                                      # Newton refine
        p = e * r                                                      # probabilities

        acc = acc + jnp.einsum('bts,bsc->btc', p, vh,
                               preferred_element_type=jnp.float32)     # (Bb, T, C)

    # Output projection on the flattened rows (fused with the implicit concat).
    out = jnp.dot(acc.reshape(M, C), wp_ref[...],
                  preferred_element_type=jnp.float32) + bp_ref[...]
    o_ref[...] = out.reshape(Bb, T, C).astype(o_ref.dtype)


def _pick_b_blk(B, T):
    """Choose the batch block size.

    Targets ~512-1024 matmul rows per grid step (amortizes the ~0.35 us/step
    pipeline overhead and fills >=256-row MXU passes on v6e/v7x) while keeping
    the lane-padded f32 blocks plus in-kernel intermediates well inside the
    scoped-VMEM budget on v5e/v6e/v7x.  Keeps >=2 grid blocks for large
    batches (v7x megacore) and prefers a divisor of B so no padding copy of x
    is ever materialized.
    """
    cap = max(1, 1024 // T)            # <=1024 rows/step (~6 MiB peak VMEM at C=32)
    b = min(B, cap)
    if B * T >= 512:                   # batch big enough: leave >=2 blocks for v7x's 2 TCs
        b = min(b, -(-B // 2))
    d = b
    while d > 1 and B % d != 0:        # largest divisor of B not above the target
        d -= 1
    if 2 * d >= b:                     # close enough to the target: avoids padding
        b = d
    return max(b, 1)


def multi_head_attention(x, w_qkv, wp, bp, *, b_blk=None):
    """x: (B, T, C).  w_qkv: (C, 3C) fused pre-transposed QKV weight,
    wp: (C, C) pre-transposed projection weight, bp: (1, C) bias."""
    B, T, C = x.shape

    if b_blk is None:
        b_blk = _pick_b_blk(B, T)

    n_blocks = -(-B // b_blk)
    B_pad = n_blocks * b_blk
    if B_pad != B:
        # Rare fallback (only if no reasonable divisor of B exists); costs one
        # extra HBM copy of x.
        x = jnp.pad(x, ((0, B_pad - B), (0, 0), (0, 0)))

    out = pl.pallas_call(
        mha_kernel,
        out_shape=jax.ShapeDtypeStruct((B_pad, T, C), x.dtype),
        grid_spec=pltpu.PrefetchScalarGridSpec(
            num_scalar_prefetch=0,
            grid=(n_blocks,),
            in_specs=[
                pl.BlockSpec((b_blk, T, C), lambda b: (b, 0, 0)),   # x
                pl.BlockSpec((C, 3 * C), lambda b: (0, 0)),         # fused Wqkv
                pl.BlockSpec((C, C), lambda b: (0, 0)),             # Wproj
                pl.BlockSpec((1, C), lambda b: (0, 0)),             # bias
            ],
            out_specs=pl.BlockSpec((b_blk, T, C), lambda b: (b, 0, 0)),
        ),
        compiler_params=pltpu.CompilerParams(
            dimension_semantics=("parallel",),
            # Headroom for the lane-padded blocks + intermediates at b_blk<=128;
            # 32 MiB is within every generation's physical VMEM (64-128 MiB).
            vmem_limit_bytes=32 * 1024 * 1024,
        ),
    )(x, w_qkv, wp, bp)

    return out[:B] if B_pad != B else out


def reference_mha(x, w_qkv, wp, bp):
    """Pure-JAX reference mirroring the PyTorch forward."""
    B, T, C = x.shape
    xf = x.astype(jnp.float32)
    q = xf @ w_qkv[:, 0:C]
    k = xf @ w_qkv[:, C:2 * C]
    v = xf @ w_qkv[:, 2 * C:3 * C]
    tril = jnp.tril(jnp.ones((T, T), dtype=bool))
    outs = []
    for h in range(NUM_HEADS):
        sl = slice(h * HEAD_SIZE, (h + 1) * HEAD_SIZE)
        wei = (q[:, :, sl] @ jnp.swapaxes(k[:, :, sl], -2, -1)) * (C ** -0.5)
        wei = jnp.where(tril[None], wei, -jnp.inf)
        wei = jax.nn.softmax(wei, axis=-1)
        outs.append(wei @ v[:, :, sl])
    cat = jnp.concatenate(outs, axis=-1)
    return cat @ wp + bp


if __name__ == "__main__":
    key = jax.random.PRNGKey(0)
    B, T, C = 2, BLOCK_SIZE, N_EMBD

    keys = jax.random.split(key, 3 * NUM_HEADS + 3)

    # Per-head nn.Linear(n_embd, head_size, bias=False) weights, PyTorch shape
    # (head_size, n_embd).  Deterministic uniform init like nn.Linear's default.
    def linear_w(k, fan_out, fan_in):
        bound = 1.0 / math.sqrt(fan_in)
        return jax.random.uniform(k, (fan_out, fan_in), jnp.float32, -bound, bound)

    wq_heads = [linear_w(keys[3 * h + 0], HEAD_SIZE, N_EMBD) for h in range(NUM_HEADS)]
    wk_heads = [linear_w(keys[3 * h + 1], HEAD_SIZE, N_EMBD) for h in range(NUM_HEADS)]
    wv_heads = [linear_w(keys[3 * h + 2], HEAD_SIZE, N_EMBD) for h in range(NUM_HEADS)]

    # Concatenate heads along the output axis and transpose -> (C, H*hs) each,
    # then fuse Q/K/V along the output axis -> (C, 3C).
    wq = jnp.concatenate(wq_heads, axis=0).T            # (C, C)
    wk = jnp.concatenate(wk_heads, axis=0).T            # (C, C)
    wv = jnp.concatenate(wv_heads, axis=0).T            # (C, C)
    w_qkv = jnp.concatenate([wq, wk, wv], axis=1)       # (C, 3C)

    # proj = nn.Linear(n_embd, n_embd): weight (C, C), bias (C,)
    wp_pt = linear_w(keys[-3], N_EMBD, N_EMBD)
    bound = 1.0 / math.sqrt(N_EMBD)
    bp_pt = jax.random.uniform(keys[-2], (N_EMBD,), jnp.float32, -bound, bound)
    wp = wp_pt.T                                        # (C, C), pre-transposed
    bp = bp_pt.reshape(1, N_EMBD)                       # (1, C)

    x = jax.random.normal(keys[-1], (B, T, C), jnp.float32)

    out = multi_head_attention(x, w_qkv, wp, bp)
    out = jax.block_until_ready(out)

    ref = reference_mha(x, w_qkv, wp, bp)
    assert out.shape == (B, T, C)
    assert jnp.allclose(out, ref, atol=1e-4, rtol=1e-4), float(jnp.max(jnp.abs(out - ref)))

    print("KERNEL_OK")
</pallas_src>

<mosaic_0001>
module attributes {stable_mosaic.version = 11 : i64} {
  func.func @mha_kernel(%arg0: i32, %arg1: memref<2x8x32xf32, #tpu.memory_space<vmem>>, %arg2: memref<32x96xf32, #tpu.memory_space<vmem>>, %arg3: memref<32x32xf32, #tpu.memory_space<vmem>>, %arg4: memref<1x32xf32, #tpu.memory_space<vmem>>, %arg5: memref<2x8x32xf32, #tpu.memory_space<vmem>>) attributes {dimension_semantics = [#tpu.dimension_semantics<parallel>], iteration_bounds = array<i64: 1>, scalar_prefetch = 0 : i64, scratch_operands = 0 : i64, tpu.core_type = #tpu.core_type<tc>, window_params = [{transform_indices = @transform_0, window_bounds = array<i64: 2, 8, 32>}, {pipeline_mode = #tpu.pipeline_mode<synchronous>, transform_indices = @transform_1, window_bounds = array<i64: 32, 96>}, {pipeline_mode = #tpu.pipeline_mode<synchronous>, transform_indices = @transform_2, window_bounds = array<i64: 32, 32>}, {pipeline_mode = #tpu.pipeline_mode<synchronous>, transform_indices = @transform_3, window_bounds = array<i64: 1, 32>}, {transform_indices = @transform_4, window_bounds = array<i64: 2, 8, 32>}]} {
    %c0 = arith.constant 0 : index
    %c0_0 = arith.constant 0 : index
    %c0_1 = arith.constant 0 : index
    %0 = vector.load %arg1[%c0, %c0_0, %c0_1] : memref<2x8x32xf32, #tpu.memory_space<vmem>>, vector<2x8x32xf32>
    %1 = vector.shape_cast %0 : vector<2x8x32xf32> to vector<16x32xf32>
    %c0_2 = arith.constant 0 : index
    %c0_3 = arith.constant 0 : index
    %2 = vector.load %arg2[%c0_2, %c0_3] : memref<32x96xf32, #tpu.memory_space<vmem>>, vector<32x96xf32>
    %cst = arith.constant dense<0.000000e+00> : vector<16x96xf32>
    %3 = tpu.matmul %1, %2, %cst {dimension_numbers = #tpu.dot_dimension_numbers<[1], [0], [0], [1], [0, 0, 1, 1], [], []>} : vector<16x32xf32>, vector<32x96xf32>, vector<16x96xf32> -> vector<16x96xf32>
    %4 = vector.extract_strided_slice %3 {offsets = [0, 0], sizes = [16, 32], strides = [1, 1]} : vector<16x96xf32> to vector<16x32xf32>
    %cst_4 = arith.constant 0.176776692 : f32
    %5 = vector.broadcast %cst_4 : f32 to vector<16x32xf32>
    %6 = arith.mulf %4, %5 : vector<16x32xf32>
    %7 = vector.shape_cast %6 : vector<16x32xf32> to vector<2x8x32xf32>
    %8 = vector.extract_strided_slice %3 {offsets = [0, 32], sizes = [16, 32], strides = [1, 1]} : vector<16x96xf32> to vector<16x32xf32>
    %9 = vector.shape_cast %8 : vector<16x32xf32> to vector<2x8x32xf32>
    %10 = vector.extract_strided_slice %3 {offsets = [0, 64], sizes = [16, 32], strides = [1, 1]} : vector<16x96xf32> to vector<16x32xf32>
    %11 = vector.shape_cast %10 : vector<16x32xf32> to vector<2x8x32xf32>
    %12 = tpu.iota {dimensions = array<i32: 1>} : vector<1x8x8xi32>
    %13 = tpu.iota {dimensions = array<i32: 2>} : vector<1x8x8xi32>
    %14 = arith.cmpi sle, %13, %12 : vector<1x8x8xi32>
    %cst_5 = arith.constant 0.000000e+00 : f32
    %cst_6 = arith.constant -1.000000e+30 : f32
    %15 = vector.broadcast %cst_5 : f32 to vector<1x8x8xf32>
    %16 = vector.broadcast %cst_6 : f32 to vector<1x8x8xf32>
    %17 = arith.select %14, %15, %16 : vector<1x8x8xi1>, vector<1x8x8xf32>
    %18 = tpu.iota {dimensions = array<i32: 2>} : vector<1x1x32xi32>
    %cst_7 = arith.constant 0.000000e+00 : f32
    %19 = vector.broadcast %cst_7 : f32 to vector<2x8x32xf32>
    %c0_i32 = arith.constant 0 : i32
    %20 = vector.broadcast %c0_i32 : i32 to vector<1x1x32xi32>
    %21 = arith.cmpi sge, %18, %20 : vector<1x1x32xi32>
    %c8_i32 = arith.constant 8 : i32
    %22 = vector.broadcast %c8_i32 : i32 to vector<1x1x32xi32>
    %23 = arith.cmpi slt, %18, %22 : vector<1x1x32xi32>
    %24 = arith.andi %21, %23 : vector<1x1x32xi1>
    %25 = arith.extui %24 : vector<1x1x32xi1> to vector<1x1x32xi32>
    %26 = arith.sitofp %25 : vector<1x1x32xi32> to vector<1x1x32xf32>
    %27 = vector.broadcast %26 : vector<1x1x32xf32> to vector<2x8x32xf32>
    %28 = arith.mulf %9, %27 : vector<2x8x32xf32>
    %29 = vector.broadcast %26 : vector<1x1x32xf32> to vector<2x8x32xf32>
    %30 = arith.mulf %11, %29 : vector<2x8x32xf32>
    "tpu.trace_start"() <{level = 10 : i32, message = "btc,bsc->bts"}> : () -> ()
    %cst_8 = arith.constant dense<0.000000e+00> : vector<2x8x8xf32>
    %31 = tpu.matmul %7, %28, %cst_8 {dimension_numbers = #tpu.dot_dimension_numbers<[2], [2], [1], [1], [0, 0, 0, 1, 1, 1], [0], [0]>} : vector<2x8x32xf32>, vector<2x8x32xf32>, vector<2x8x8xf32> -> vector<2x8x8xf32>
    "tpu.trace_stop"() : () -> ()
    %32 = vector.broadcast %17 : vector<1x8x8xf32> to vector<2x8x8xf32>
    %33 = arith.addf %31, %32 : vector<2x8x8xf32>
    %cst_9 = arith.constant dense<0xFF800000> : vector<2x8xf32>
    %34 = vector.multi_reduction <maximumf>, %33, %cst_9 [2] : vector<2x8x8xf32> to vector<2x8xf32>
    %35 = vector.shape_cast %34 : vector<2x8xf32> to vector<2x8x1xf32>
    %36 = vector.broadcast %35 : vector<2x8x1xf32> to vector<2x8x8xf32>
    %37 = arith.subf %33, %36 : vector<2x8x8xf32>
    %38 = math.exp %37 : vector<2x8x8xf32>
    %cst_10 = arith.constant dense<0.000000e+00> : vector<2x8xf32>
    %39 = vector.multi_reduction <add>, %38, %cst_10 [2] : vector<2x8x8xf32> to vector<2x8xf32>
    %40 = vector.shape_cast %39 : vector<2x8xf32> to vector<2x8x1xf32>
    %41 = tpu.reciprocal %40 {approx = true} : vector<2x8x1xf32> -> vector<2x8x1xf32>
    %42 = arith.mulf %40, %41 : vector<2x8x1xf32>
    %cst_11 = arith.constant 2.000000e+00 : f32
    %43 = vector.broadcast %cst_11 : f32 to vector<2x8x1xf32>
    %44 = arith.subf %43, %42 : vector<2x8x1xf32>
    %45 = arith.mulf %41, %44 : vector<2x8x1xf32>
    %46 = vector.broadcast %45 : vector<2x8x1xf32> to vector<2x8x8xf32>
    %47 = arith.mulf %38, %46 : vector<2x8x8xf32>
    "tpu.trace_start"() <{level = 10 : i32, message = "bts,bsc->btc"}> : () -> ()
    %cst_12 = arith.constant dense<0.000000e+00> : vector<2x8x32xf32>
    %48 = tpu.matmul %47, %30, %cst_12 {dimension_numbers = #tpu.dot_dimension_numbers<[2], [1], [1], [2], [0, 0, 0, 1, 1, 2], [0], [0]>} : vector<2x8x8xf32>, vector<2x8x32xf32>, vector<2x8x32xf32> -> vector<2x8x32xf32>
    "tpu.trace_stop"() : () -> ()
    %49 = arith.addf %19, %48 : vector<2x8x32xf32>
    %c8_i32_13 = arith.constant 8 : i32
    %50 = vector.broadcast %c8_i32_13 : i32 to vector<1x1x32xi32>
    %51 = arith.cmpi sge, %18, %50 : vector<1x1x32xi32>
    %c16_i32 = arith.constant 16 : i32
    %52 = vector.broadcast %c16_i32 : i32 to vector<1x1x32xi32>
    %53 = arith.cmpi slt, %18, %52 : vector<1x1x32xi32>
    %54 = arith.andi %51, %53 : vector<1x1x32xi1>
    %55 = arith.extui %54 : vector<1x1x32xi1> to vector<1x1x32xi32>
    %56 = arith.sitofp %55 : vector<1x1x32xi32> to vector<1x1x32xf32>
    %57 = vector.broadcast %56 : vector<1x1x32xf32> to vector<2x8x32xf32>
    %58 = arith.mulf %9, %57 : vector<2x8x32xf32>
    %59 = vector.broadcast %56 : vector<1x1x32xf32> to vector<2x8x32xf32>
    %60 = arith.mulf %11, %59 : vector<2x8x32xf32>
    "tpu.trace_start"() <{level = 10 : i32, message = "btc,bsc->bts"}> : () -> ()
    %cst_14 = arith.constant dense<0.000000e+00> : vector<2x8x8xf32>
    %61 = tpu.matmul %7, %58, %cst_14 {dimension_numbers = #tpu.dot_dimension_numbers<[2], [2], [1], [1], [0, 0, 0, 1, 1, 1], [0], [0]>} : vector<2x8x32xf32>, vector<2x8x32xf32>, vector<2x8x8xf32> -> vector<2x8x8xf32>
    "tpu.trace_stop"() : () -> ()
    %62 = vector.broadcast %17 : vector<1x8x8xf32> to vector<2x8x8xf32>
    %63 = arith.addf %61, %62 : vector<2x8x8xf32>
    %cst_15 = arith.constant dense<0xFF800000> : vector<2x8xf32>
    %64 = vector.multi_reduction <maximumf>, %63, %cst_15 [2] : vector<2x8x8xf32> to vector<2x8xf32>
    %65 = vector.shape_cast %64 : vector<2x8xf32> to vector<2x8x1xf32>
    %66 = vector.broadcast %65 : vector<2x8x1xf32> to vector<2x8x8xf32>
    %67 = arith.subf %63, %66 : vector<2x8x8xf32>
    %68 = math.exp %67 : vector<2x8x8xf32>
    %cst_16 = arith.constant dense<0.000000e+00> : vector<2x8xf32>
    %69 = vector.multi_reduction <add>, %68, %cst_16 [2] : vector<2x8x8xf32> to vector<2x8xf32>
    %70 = vector.shape_cast %69 : vector<2x8xf32> to vector<2x8x1xf32>
    %71 = tpu.reciprocal %70 {approx = true} : vector<2x8x1xf32> -> vector<2x8x1xf32>
    %72 = arith.mulf %70, %71 : vector<2x8x1xf32>
    %cst_17 = arith.constant 2.000000e+00 : f32
    %73 = vector.broadcast %cst_17 : f32 to vector<2x8x1xf32>
    %74 = arith.subf %73, %72 : vector<2x8x1xf32>
    %75 = arith.mulf %71, %74 : vector<2x8x1xf32>
    %76 = vector.broadcast %75 : vector<2x8x1xf32> to vector<2x8x8xf32>
    %77 = arith.mulf %68, %76 : vector<2x8x8xf32>
    "tpu.trace_start"() <{level = 10 : i32, message = "bts,bsc->btc"}> : () -> ()
    %cst_18 = arith.constant dense<0.000000e+00> : vector<2x8x32xf32>
    %78 = tpu.matmul %77, %60, %cst_18 {dimension_numbers = #tpu.dot_dimension_numbers<[2], [1], [1], [2], [0, 0, 0, 1, 1, 2], [0], [0]>} : vector<2x8x8xf32>, vector<2x8x32xf32>, vector<2x8x32xf32> -> vector<2x8x32xf32>
    "tpu.trace_stop"() : () -> ()
    %79 = arith.addf %49, %78 : vector<2x8x32xf32>
    %c16_i32_19 = arith.constant 16 : i32
    %80 = vector.broadcast %c16_i32_19 : i32 to vector<1x1x32xi32>
    %81 = arith.cmpi sge, %18, %80 : vector<1x1x32xi32>
    %c24_i32 = arith.constant 24 : i32
    %82 = vector.broadcast %c24_i32 : i32 to vector<1x1x32xi32>
    %83 = arith.cmpi slt, %18, %82 : vector<1x1x32xi32>
    %84 = arith.andi %81, %83 : vector<1x1x32xi1>
    %85 = arith.extui %84 : vector<1x1x32xi1> to vector<1x1x32xi32>
    %86 = arith.sitofp %85 : vector<1x1x32xi32> to vector<1x1x32xf32>
    %87 = vector.broadcast %86 : vector<1x1x32xf32> to vector<2x8x32xf32>
    %88 = arith.mulf %9, %87 : vector<2x8x32xf32>
    %89 = vector.broadcast %86 : vector<1x1x32xf32> to vector<2x8x32xf32>
    %90 = arith.mulf %11, %89 : vector<2x8x32xf32>
    "tpu.trace_start"() <{level = 10 : i32, message = "btc,bsc->bts"}> : () -> ()
    %cst_20 = arith.constant dense<0.000000e+00> : vector<2x8x8xf32>
    %91 = tpu.matmul %7, %88, %cst_20 {dimension_numbers = #tpu.dot_dimension_numbers<[2], [2], [1], [1], [0, 0, 0, 1, 1, 1], [0], [0]>} : vector<2x8x32xf32>, vector<2x8x32xf32>, vector<2x8x8xf32> -> vector<2x8x8xf32>
    "tpu.trace_stop"() : () -> ()
    %92 = vector.broadcast %17 : vector<1x8x8xf32> to vector<2x8x8xf32>
    %93 = arith.addf %91, %92 : vector<2x8x8xf32>
    %cst_21 = arith.constant dense<0xFF800000> : vector<2x8xf32>
    %94 = vector.multi_reduction <maximumf>, %93, %cst_21 [2] : vector<2x8x8xf32> to vector<2x8xf32>
    %95 = vector.shape_cast %94 : vector<2x8xf32> to vector<2x8x1xf32>
    %96 = vector.broadcast %95 : vector<2x8x1xf32> to vector<2x8x8xf32>
    %97 = arith.subf %93, %96 : vector<2x8x8xf32>
    %98 = math.exp %97 : vector<2x8x8xf32>
    %cst_22 = arith.constant dense<0.000000e+00> : vector<2x8xf32>
    %99 = vector.multi_reduction <add>, %98, %cst_22 [2] : vector<2x8x8xf32> to vector<2x8xf32>
    %100 = vector.shape_cast %99 : vector<2x8xf32> to vector<2x8x1xf32>
    %101 = tpu.reciprocal %100 {approx = true} : vector<2x8x1xf32> -> vector<2x8x1xf32>
    %102 = arith.mulf %100, %101 : vector<2x8x1xf32>
    %cst_23 = arith.constant 2.000000e+00 : f32
    %103 = vector.broadcast %cst_23 : f32 to vector<2x8x1xf32>
    %104 = arith.subf %103, %102 : vector<2x8x1xf32>
    %105 = arith.mulf %101, %104 : vector<2x8x1xf32>
    %106 = vector.broadcast %105 : vector<2x8x1xf32> to vector<2x8x8xf32>
    %107 = arith.mulf %98, %106 : vector<2x8x8xf32>
    "tpu.trace_start"() <{level = 10 : i32, message = "bts,bsc->btc"}> : () -> ()
    %cst_24 = arith.constant dense<0.000000e+00> : vector<2x8x32xf32>
    %108 = tpu.matmul %107, %90, %cst_24 {dimension_numbers = #tpu.dot_dimension_numbers<[2], [1], [1], [2], [0, 0, 0, 1, 1, 2], [0], [0]>} : vector<2x8x8xf32>, vector<2x8x32xf32>, vector<2x8x32xf32> -> vector<2x8x32xf32>
    "tpu.trace_stop"() : () -> ()
    %109 = arith.addf %79, %108 : vector<2x8x32xf32>
    %c24_i32_25 = arith.constant 24 : i32
    %110 = vector.broadcast %c24_i32_25 : i32 to vector<1x1x32xi32>
    %111 = arith.cmpi sge, %18, %110 : vector<1x1x32xi32>
    %c32_i32 = arith.constant 32 : i32
    %112 = vector.broadcast %c32_i32 : i32 to vector<1x1x32xi32>
    %113 = arith.cmpi slt, %18, %112 : vector<1x1x32xi32>
    %114 = arith.andi %111, %113 : vector<1x1x32xi1>
    %115 = arith.extui %114 : vector<1x1x32xi1> to vector<1x1x32xi32>
    %116 = arith.sitofp %115 : vector<1x1x32xi32> to vector<1x1x32xf32>
    %117 = vector.broadcast %116 : vector<1x1x32xf32> to vector<2x8x32xf32>
    %118 = arith.mulf %9, %117 : vector<2x8x32xf32>
    %119 = vector.broadcast %116 : vector<1x1x32xf32> to vector<2x8x32xf32>
    %120 = arith.mulf %11, %119 : vector<2x8x32xf32>
    "tpu.trace_start"() <{level = 10 : i32, message = "btc,bsc->bts"}> : () -> ()
    %cst_26 = arith.constant dense<0.000000e+00> : vector<2x8x8xf32>
    %121 = tpu.matmul %7, %118, %cst_26 {dimension_numbers = #tpu.dot_dimension_numbers<[2], [2], [1], [1], [0, 0, 0, 1, 1, 1], [0], [0]>} : vector<2x8x32xf32>, vector<2x8x32xf32>, vector<2x8x8xf32> -> vector<2x8x8xf32>
    "tpu.trace_stop"() : () -> ()
    %122 = vector.broadcast %17 : vector<1x8x8xf32> to vector<2x8x8xf32>
    %123 = arith.addf %121, %122 : vector<2x8x8xf32>
    %cst_27 = arith.constant dense<0xFF800000> : vector<2x8xf32>
    %124 = vector.multi_reduction <maximumf>, %123, %cst_27 [2] : vector<2x8x8xf32> to vector<2x8xf32>
    %125 = vector.shape_cast %124 : vector<2x8xf32> to vector<2x8x1xf32>
    %126 = vector.broadcast %125 : vector<2x8x1xf32> to vector<2x8x8xf32>
    %127 = arith.subf %123, %126 : vector<2x8x8xf32>
    %128 = math.exp %127 : vector<2x8x8xf32>
    %cst_28 = arith.constant dense<0.000000e+00> : vector<2x8xf32>
    %129 = vector.multi_reduction <add>, %128, %cst_28 [2] : vector<2x8x8xf32> to vector<2x8xf32>
    %130 = vector.shape_cast %129 : vector<2x8xf32> to vector<2x8x1xf32>
    %131 = tpu.reciprocal %130 {approx = true} : vector<2x8x1xf32> -> vector<2x8x1xf32>
    %132 = arith.mulf %130, %131 : vector<2x8x1xf32>
    %cst_29 = arith.constant 2.000000e+00 : f32
    %133 = vector.broadcast %cst_29 : f32 to vector<2x8x1xf32>
    %134 = arith.subf %133, %132 : vector<2x8x1xf32>
    %135 = arith.mulf %131, %134 : vector<2x8x1xf32>
    %136 = vector.broadcast %135 : vector<2x8x1xf32> to vector<2x8x8xf32>
    %137 = arith.mulf %128, %136 : vector<2x8x8xf32>
    "tpu.trace_start"() <{level = 10 : i32, message = "bts,bsc->btc"}> : () -> ()
    %cst_30 = arith.constant dense<0.000000e+00> : vector<2x8x32xf32>
    %138 = tpu.matmul %137, %120, %cst_30 {dimension_numbers = #tpu.dot_dimension_numbers<[2], [1], [1], [2], [0, 0, 0, 1, 1, 2], [0], [0]>} : vector<2x8x8xf32>, vector<2x8x32xf32>, vector<2x8x32xf32> -> vector<2x8x32xf32>
    "tpu.trace_stop"() : () -> ()
    %139 = arith.addf %109, %138 : vector<2x8x32xf32>
    %140 = vector.shape_cast %139 : vector<2x8x32xf32> to vector<16x32xf32>
    %c0_31 = arith.constant 0 : index
    %c0_32 = arith.constant 0 : index
    %141 = vector.load %arg3[%c0_31, %c0_32] : memref<32x32xf32, #tpu.memory_space<vmem>>, vector<32x32xf32>
    %cst_33 = arith.constant dense<0.000000e+00> : vector<16x32xf32>
    %142 = tpu.matmul %140, %141, %cst_33 {dimension_numbers = #tpu.dot_dimension_numbers<[1], [0], [0], [1], [0, 0, 1, 1], [], []>} : vector<16x32xf32>, vector<32x32xf32>, vector<16x32xf32> -> vector<16x32xf32>
    %c0_34 = arith.constant 0 : index
    %c0_35 = arith.constant 0 : index
    %143 = vector.load %arg4[%c0_34, %c0_35] : memref<1x32xf32, #tpu.memory_space<vmem>>, vector<1x32xf32>
    %144 = vector.broadcast %143 : vector<1x32xf32> to vector<16x32xf32>
    %145 = arith.addf %142, %144 : vector<16x32xf32>
    %146 = vector.shape_cast %145 : vector<16x32xf32> to vector<2x8x32xf32>
    %c0_36 = arith.constant 0 : index
    %c0_37 = arith.constant 0 : index
    %c0_38 = arith.constant 0 : index
    %147 = vector.load %arg5[%c0_36, %c0_37, %c0_38] : memref<2x8x32xf32, #tpu.memory_space<vmem>>, vector<2x8x32xf32>
    tpu.vector_store %arg5[%c0_36, %c0_37, %c0_38], %146 {strides = array<i32>} : memref<2x8x32xf32, #tpu.memory_space<vmem>>, vector<2x8x32xf32>,
    return
  }
  func.func @transform_0(%arg0: i32) -> (i32, i32, i32) {
    %c0_i32 = arith.constant 0 : i32
    %c0_i32_0 = arith.constant 0 : i32
    %c0_i32_1 = arith.constant 0 : i32
    return %arg0, %c0_i32, %c0_i32_0 : i32, i32, i32
  }
  func.func @transform_1(%arg0: i32) -> (i32, i32) {
    %c0_i32 = arith.constant 0 : i32
    %c0_i32_0 = arith.constant 0 : i32
    %c0_i32_1 = arith.constant 0 : i32
    return %c0_i32, %c0_i32_0 : i32, i32
  }
  func.func @transform_2(%arg0: i32) -> (i32, i32) {
    %c0_i32 = arith.constant 0 : i32
    %c0_i32_0 = arith.constant 0 : i32
    %c0_i32_1 = arith.constant 0 : i32
    return %c0_i32, %c0_i32_0 : i32, i32
  }
  func.func @transform_3(%arg0: i32) -> (i32, i32) {
    %c0_i32 = arith.constant 0 : i32
    %c0_i32_0 = arith.constant 0 : i32
    %c0_i32_1 = arith.constant 0 : i32
    return %c0_i32, %c0_i32_0 : i32, i32
  }
  func.func @transform_4(%arg0: i32) -> (i32, i32, i32) {
    %c0_i32 = arith.constant 0 : i32
    %c0_i32_0 = arith.constant 0 : i32
    %c0_i32_1 = arith.constant 0 : i32
    return %arg0, %c0_i32, %c0_i32_0 : i32, i32, i32
  }
}

</mosaic_0001>

<llo_original>
// kernel: tpu_custom_call.1
$region0: #{tpu_custom_call.1}
  #allocation0 [shape = 'u32[]', space=smem, size = 0x4, offset = 0x4, fixed_abs, tag = 'smem constant byte address 0x4 - core index']
  #allocation1 [shape = 'u32[144,128]{1,0:T(1,128)}', space=vmem, size = 0x12000, scoped, tag = 'internal scratch']
  %s0 = inlined_call_operand.hbm [shape: f32[2,8,32], index: 0, kind: input, shape index: {}]
  %s1 = inlined_call_operand.hbm [shape: f32[32,96], index: 1, kind: input, shape index: {}]
  %s2 = inlined_call_operand.hbm [shape: f32[32,32], index: 2, kind: input, shape index: {}]
  %s3 = inlined_call_operand.vmem [shape: f32[1,32], index: 3, kind: input, shape index: {}]
  %s4 = inlined_call_operand.hbm [shape: f32[2,8,32], index: 4, kind: output, shape index: {}]
  %s5 = sld [smem:[#allocation0]]
  $region38: #{tpu_custom_call.1} parent=0
    _
  %s7 = ssub.s32 1, %s5
  %s8 = scalar_select 0, %s7, %s5
  $region1: #{tpu_custom_call.1} parent=0
    #allocation2 [shape = 'u8[8192]{0}', space=vmem, size = 0x2000, scoped, tag = 'input window, operand 0, single buffered']
    #allocation3 [shape = 's32[1]{0}', space=sflag, size = 0x4, scoped, tag = 'scoped memory for tpu_custom_call.1']
    #allocation4 [shape = 's32[1]{0}', space=sflag, size = 0x4, scoped, tag = 'scoped memory for tpu_custom_call.1']
    #allocation5 [shape = 'u8[16384]{0}', space=vmem, size = 0x4000, scoped, tag = 'input window, operand 1, single buffered']
    #allocation6 [shape = 's32[1]{0}', space=sflag, size = 0x4, scoped, tag = 'scoped memory for tpu_custom_call.1']
    #allocation7 [shape = 'u8[16384]{0}', space=vmem, size = 0x4000, scoped, tag = 'input window, operand 2, single buffered']
    #allocation8 [shape = 'u8[8192]{0}', space=vmem, size = 0x2000, scoped, tag = 'output window, operand 0, single buffered']
    %9 = vsyncpa [#allocation3], 0
    %10 = vsyncpa [#allocation6], 0
    %11 = vsyncpa [#allocation4], 0
    // Predicated region
    $region2: #{tpu_custom_call.1} parent=1 // pred_check
      _
    $region3: #{tpu_custom_call.1} parent=1 // pred_check_branch
      %13 = sbr.rel (0) target = $region5
    $region4: #{tpu_custom_call.1} parent=1 // pred_region
      %s15 = ssub.s32 256, 256
      %16 = vsyncadd [#allocation3], %s15
      %s17 = sshll.u32 [#allocation2], 4
      %s18 = int_to_ptr.vmem [resolvable:$true] %s17
      %23 = dma.hbm_to_vmem [thread:$0]  %s0, 256, %s18, [#allocation3], 128, 128, 8
    $region5: #{tpu_custom_call.1} parent=1 // pred_fallthru
      _
    // Predicated region
    $region6: #{tpu_custom_call.1} parent=1 // pred_check
      _
    $region7: #{tpu_custom_call.1} parent=1 // pred_check_branch
      %25 = sbr.rel (0) target = $region9
    $region8: #{tpu_custom_call.1} parent=1 // pred_region
      %s27 = ssub.s32 512, 512
      %28 = vsyncadd [#allocation6], %s27
      %s29 = sshll.u32 [#allocation5], 4
      %s30 = int_to_ptr.vmem [resolvable:$true] %s29
      %35 = dma.hbm_to_vmem [thread:$0]  %s1, 512, %s30, [#allocation6], 128, 128, 8
    $region9: #{tpu_custom_call.1} parent=1 // pred_fallthru
      _
    // Predicated region
    $region10: #{tpu_custom_call.1} parent=1 // pred_check
      _
    $region11: #{tpu_custom_call.1} parent=1 // pred_check_branch
      %37 = sbr.rel (0) target = $region13
    $region12: #{tpu_custom_call.1} parent=1 // pred_region
      %s39 = ssub.s32 512, 512
      %40 = vsyncadd [#allocation6], %s39
      %s41 = sshll.u32 [#allocation7], 4
      %s42 = int_to_ptr.vmem [resolvable:$true] %s41
      %47 = dma.hbm_to_vmem [thread:$0]  %s2, 512, %s42, [#allocation6], 128, 128, 8
    $region13: #{tpu_custom_call.1} parent=1 // pred_fallthru
      _
    // Predicated region
    $region14: #{tpu_custom_call.1} parent=1 // pred_check
      _
    $region15: #{tpu_custom_call.1} parent=1 // pred_check_branch
      %49 = sbr.rel (0) target = $region17
    $region16: #{tpu_custom_call.1} parent=1 // pred_region
      _
    $region17: #{tpu_custom_call.1} parent=1 // pred_fallthru
      _
    // Predicated region
    $region18: #{tpu_custom_call.1} parent=1 // pred_check
      _
    $region19: #{tpu_custom_call.1} parent=1 // pred_check_branch
      %51 = sbr.rel (0) target = $region21
    $region20: #{tpu_custom_call.1} parent=1 // pred_region
      %52 = dma.done [#allocation3], 256
    $region21: #{tpu_custom_call.1} parent=1 // pred_fallthru
      _
    // Predicated region
    $region22: #{tpu_custom_call.1} parent=1 // pred_check
      _
    $region23: #{tpu_custom_call.1} parent=1 // pred_check_branch
      %54 = sbr.rel (0) target = $region25
    $region24: #{tpu_custom_call.1} parent=1 // pred_region
      %55 = dma.done [#allocation6], 512
    $region25: #{tpu_custom_call.1} parent=1 // pred_fallthru
      _
    // Predicated region
    $region26: #{tpu_custom_call.1} parent=1 // pred_check
      _
    $region27: #{tpu_custom_call.1} parent=1 // pred_check_branch
      %57 = sbr.rel (0) target = $region29
    $region28: #{tpu_custom_call.1} parent=1 // pred_region
      %58 = dma.done [#allocation6], 512
    $region29: #{tpu_custom_call.1} parent=1 // pred_fallthru
      _
    %v59 = vld [vmem:[#allocation2] sm:$0xff]
    %v60 = vld [vmem:[#allocation2 + $0x8] sm:$0xff]
    %v61 = vld [vmem:[#allocation5] sm:$0xff]
    %v62 = vld [vmem:[#allocation5 + $0x8] sm:$0xff]
    %v63 = vld [vmem:[#allocation5 + $0x10] sm:$0xff]
    %v64 = vld [vmem:[#allocation5 + $0x18] sm:$0xff]
    %vm65 = vcmask 261120
    %v67 = vsel %vm65, %v59, 0
    %v70 = vsel %vm65, %v60, 0
    %72 = vmatprep.subr.mxu0 0.0
    %73 = vmatpush1.msra.mxu0 %v61
    %74 = vmatprep.subr.mxu0 0.0
    %75 = vmatpush1.msra.mxu0 %v62
    %76 = vmatprep.subr.mxu0 0.0
    %77 = vmatpush1.msra.mxu0 %v63
    %78 = vmatprep.subr.mxu0 0.0
    %79 = vmatpush1.msra.mxu0 %v64
    %80 = vmatprep.subr.mxu0 0.0
    %81 = vmatpush1.msra.mxu0 0.0
    %82 = vmatprep.subr.mxu0 0.0
    %83 = vmatpush1.msra.mxu0 0.0
    %84 = vmatprep.subr.mxu0 0.0
    %85 = vmatpush1.msra.mxu0 0.0
    %86 = vmatprep.subr.mxu0 0.0
    %87 = vmatpush1.msra.mxu0 0.0
    %88 = vmatprep.subr.mxu0 0.0
    %89 = vmatpush1.msra.mxu0 0.0
    %90 = vmatprep.subr.mxu0 0.0
    %91 = vmatpush1.msra.mxu0 0.0
    %92 = vmatprep.subr.mxu0 0.0
    %93 = vmatpush1.msra.mxu0 0.0
    %94 = vmatprep.subr.mxu0 0.0
    %95 = vmatpush1.msra.mxu0 0.0
    %96 = vmatprep.subr.mxu0 0.0
    %97 = vmatpush1.msra.mxu0 0.0
    %98 = vmatprep.subr.mxu0 0.0
    %99 = vmatpush1.msra.mxu0 0.0
    %100 = vmatprep.subr.mxu0 0.0
    %101 = vmatpush1.msra.mxu0 0.0
    %102 = vmatprep.subr.mxu0 0.0
    %103 = vmatpush1.msra.mxu0 0.0
    %104 = vmatprep.subr.mxu0 0.0
    %105 = vmatpush1.msra.mxu0 0.0
    %106 = vmatprep.subr.mxu0 0.0
    %107 = vmatpush1.msra.mxu0 0.0
    %108 = vmatprep.subr.mxu0 0.0
    %109 = vmatpush1.msra.mxu0 0.0
    %110 = vmatprep.subr.mxu0 0.0
    %111 = vmatpush1.msra.mxu0 0.0
    %112 = vmatprep.subr.mxu0 0.0
    %113 = vmatpush1.msra.mxu0 0.0
    %114 = vmatprep.subr.mxu0 0.0
    %115 = vmatpush1.msra.mxu0 0.0
    %116 = vmatprep.subr.mxu0 0.0
    %117 = vmatpush1.msra.mxu0 0.0
    %118 = vmatprep.subr.mxu0 0.0
    %119 = vmatpush1.msra.mxu0 0.0
    %120 = vmatprep.subr.mxu0 0.0
    %121 = vmatpush1.msra.mxu0 0.0
    %122 = vmatprep.subr.mxu0 0.0
    %123 = vmatpush1.msra.mxu0 0.0
    %124 = vmatprep.subr.mxu0 0.0
    %125 = vmatpush1.msra.mxu0 0.0
    %126 = vmatprep.subr.mxu0 0.0
    %127 = vmatpush1.msra.mxu0 0.0
    %128 = vmatprep.subr.mxu0 0.0
    %129 = vmatpush1.msra.mxu0 0.0
    %130 = vmatprep.subr.mxu0 0.0
    %131 = vmatpush1.msra.mxu0 0.0
    %132 = vmatprep.subr.mxu0 0.0
    %133 = vmatpush1.msra.mxu0 0.0
    %134 = vmatprep.subr.mxu0 0.0
    %135 = vmatpush1.msra.mxu0 0.0
    %136 = vmatprep.mubr.f32.mxu0 0.0
    %137 = vmatmul.mubr.f32.gmra.mrb[0].mxu0 %v67
    %v138 = vpop.f32.mrb[0].mxu0
    %v139 = vadd.f32 0.0, %v138
    %v140 = vpop.f32.mrb[0].mxu0
    %141 = vmatprep.mubr.f32.mxu0 0.0
    %142 = vmatmul.mubr.f32.gmra.mrb[0].mxu0 %v70
    %v143 = vpop.f32.mrb[0].mxu0
    %v144 = vadd.f32 0.0, %v143
    %v145 = vpop.f32.mrb[0].mxu0
    %146 = vdwg.mxu0
    %v147 = vmul.f32 %v139, 0.17677669
    %v148 = vmul.f32 %v144, 0.17677669
    %v149 = vlaneseq
    %v150 = vshrl.u32 %v149, 7
    %v151 = vlaneseq
    %v152 = vand.u32 %v151, 127
    %vm153 = vcmp.le.s32.totalorder %v152, %v150
    %v154 = vsel %vm153, 0.0, -1e+30
    %vm155 = vcmp.ge.s32.totalorder %v152, 0
    %vm156 = vcmp.lt.s32.totalorder %v152, 8
    %vm157 = vmand %vm155, %vm156
    %v158 = vsel %vm157, 1, 0
    %v159 = vcvt.s32.f32 %v158
    %161 = vrot.lane.b32.xlu0 %v159, 32
    %v162 = vpop.permute.xlu0 %161
    %v164 = vmul.f32 %v139, %v162
    %v165 = vmul.f32 %v144, %v162
    %166 = vrot.lane.b32.xlu0 %v159, 64
    %v167 = vpop.permute.xlu0 %166
    %v169 = vmul.f32 %v139, %v167
    %v170 = vmul.f32 %v144, %v167
    %172 = vrot.lane.b32.xlu0 %v164, 96
    %v173 = vpop.permute.xlu0 %172
    %v175 = vsel %vm65, %v147, 0
    %v177 = vsel %vm65, %v173, 0
    %179 = vmatprep.subr.mxu0 0.0
    %180 = vmatpush1.xpose.msra.mxu0 %v177
    %181 = vmatprep.subr.mxu0 0.0
    %182 = vmatpush1.xpose.msra.mxu0 0.0
    %183 = vmatprep.subr.mxu0 0.0
    %184 = vmatpush1.xpose.msra.mxu0 0.0
    %185 = vmatprep.subr.mxu0 0.0
    %186 = vmatpush1.xpose.msra.mxu0 0.0
    %187 = vmatprep.subr.mxu0 0.0
    %188 = vmatpush1.xpose.msra.mxu0 0.0
    %189 = vmatprep.subr.mxu0 0.0
    %190 = vmatpush1.xpose.msra.mxu0 0.0
    %191 = vmatprep.subr.mxu0 0.0
    %192 = vmatpush1.xpose.msra.mxu0 0.0
    %193 = vmatprep.subr.mxu0 0.0
    %194 = vmatpush1.xpose.msra.mxu0 0.0
    %195 = vmatprep.subr.mxu0 0.0
    %196 = vmatpush1.xpose.msra.mxu0 0.0
    %197 = vmatprep.subr.mxu0 0.0
    %198 = vmatpush1.xpose.msra.mxu0 0.0
    %199 = vmatprep.subr.mxu0 0.0
    %200 = vmatpush1.xpose.msra.mxu0 0.0
    %201 = vmatprep.subr.mxu0 0.0
    %202 = vmatpush1.xpose.msra.mxu0 0.0
    %203 = vmatprep.subr.mxu0 0.0
    %204 = vmatpush1.xpose.msra.mxu0 0.0
    %205 = vmatprep.subr.mxu0 0.0
    %206 = vmatpush1.xpose.msra.mxu0 0.0
    %207 = vmatprep.subr.mxu0 0.0
    %208 = vmatpush1.xpose.msra.mxu0 0.0
    %209 = vmatprep.subr.mxu0 0.0
    %210 = vmatpush1.xpose.msra.mxu0 0.0
    %211 = vmatprep.subr.mxu0 0.0
    %212 = vmatpush1.xpose.msra.mxu0 0.0
    %213 = vmatprep.subr.mxu0 0.0
    %214 = vmatpush1.xpose.msra.mxu0 0.0
    %215 = vmatprep.subr.mxu0 0.0
    %216 = vmatpush1.xpose.msra.mxu0 0.0
    %217 = vmatprep.subr.mxu0 0.0
    %218 = vmatpush1.xpose.msra.mxu0 0.0
    %219 = vmatprep.subr.mxu0 0.0
    %220 = vmatpush1.xpose.msra.mxu0 0.0
    %221 = vmatprep.subr.mxu0 0.0
    %222 = vmatpush1.xpose.msra.mxu0 0.0
    %223 = vmatprep.subr.mxu0 0.0
    %224 = vmatpush1.xpose.msra.mxu0 0.0
    %225 = vmatprep.subr.mxu0 0.0
    %226 = vmatpush1.xpose.msra.mxu0 0.0
    %227 = vmatprep.subr.mxu0 0.0
    %228 = vmatpush1.xpose.msra.mxu0 0.0
    %229 = vmatprep.subr.mxu0 0.0
    %230 = vmatpush1.xpose.msra.mxu0 0.0
    %231 = vmatprep.subr.mxu0 0.0
    %232 = vmatpush1.xpose.msra.mxu0 0.0
    %233 = vmatprep.subr.mxu0 0.0
    %234 = vmatpush1.xpose.msra.mxu0 0.0
    %235 = vmatprep.subr.mxu0 0.0
    %236 = vmatpush1.xpose.msra.mxu0 0.0
    %237 = vmatprep.subr.mxu0 0.0
    %238 = vmatpush1.xpose.msra.mxu0 0.0
    %239 = vmatprep.subr.mxu0 0.0
    %240 = vmatpush1.xpose.msra.mxu0 0.0
    %241 = vmatprep.subr.mxu0 0.0
    %242 = vmatpush1.xpose.msra.mxu0 0.0
    %243 = vmatprep.mubr.f32.mxu0 0.0
    %244 = vmatmul.mubr.f32.gmra.mrb[0].mxu0 %v175
    %v245 = vpop.f32.mrb[0].mxu0
    %v246 = vadd.f32 %v154, %v245
    %v247 = vpop.f32.mrb[0].mxu0
    %248 = vdwg.mxu0
    %250 = vrot.lane.b32.xlu0 %v165, 96
    %v251 = vpop.permute.xlu0 %250
    %v253 = vsel %vm65, %v148, 0
    %v255 = vsel %vm65, %v251, 0
    %257 = vmatprep.subr.mxu0 0.0
    %258 = vmatpush1.xpose.msra.mxu0 %v255
    %259 = vmatprep.subr.mxu0 0.0
    %260 = vmatpush1.xpose.msra.mxu0 0.0
    %261 = vmatprep.subr.mxu0 0.0
    %262 = vmatpush1.xpose.msra.mxu0 0.0
    %263 = vmatprep.subr.mxu0 0.0
    %264 = vmatpush1.xpose.msra.mxu0 0.0
    %265 = vmatprep.subr.mxu0 0.0
    %266 = vmatpush1.xpose.msra.mxu0 0.0
    %267 = vmatprep.subr.mxu0 0.0
    %268 = vmatpush1.xpose.msra.mxu0 0.0
    %269 = vmatprep.subr.mxu0 0.0
    %270 = vmatpush1.xpose.msra.mxu0 0.0
    %271 = vmatprep.subr.mxu0 0.0
    %272 = vmatpush1.xpose.msra.mxu0 0.0
    %273 = vmatprep.subr.mxu0 0.0
    %274 = vmatpush1.xpose.msra.mxu0 0.0
    %275 = vmatprep.subr.mxu0 0.0
    %276 = vmatpush1.xpose.msra.mxu0 0.0
    %277 = vmatprep.subr.mxu0 0.0
    %278 = vmatpush1.xpose.msra.mxu0 0.0
    %279 = vmatprep.subr.mxu0 0.0
    %280 = vmatpush1.xpose.msra.mxu0 0.0
    %281 = vmatprep.subr.mxu0 0.0
    %282 = vmatpush1.xpose.msra.mxu0 0.0
    %283 = vmatprep.subr.mxu0 0.0
    %284 = vmatpush1.xpose.msra.mxu0 0.0
    %285 = vmatprep.subr.mxu0 0.0
    %286 = vmatpush1.xpose.msra.mxu0 0.0
    %287 = vmatprep.subr.mxu0 0.0
    %288 = vmatpush1.xpose.msra.mxu0 0.0
    %289 = vmatprep.subr.mxu0 0.0
    %290 = vmatpush1.xpose.msra.mxu0 0.0
    %291 = vmatprep.subr.mxu0 0.0
    %292 = vmatpush1.xpose.msra.mxu0 0.0
    %293 = vmatprep.subr.mxu0 0.0
    %294 = vmatpush1.xpose.msra.mxu0 0.0
    %295 = vmatprep.subr.mxu0 0.0
    %296 = vmatpush1.xpose.msra.mxu0 0.0
    %297 = vmatprep.subr.mxu0 0.0
    %298 = vmatpush1.xpose.msra.mxu0 0.0
    %299 = vmatprep.subr.mxu0 0.0
    %300 = vmatpush1.xpose.msra.mxu0 0.0
    %301 = vmatprep.subr.mxu0 0.0
    %302 = vmatpush1.xpose.msra.mxu0 0.0
    %303 = vmatprep.subr.mxu0 0.0
    %304 = vmatpush1.xpose.msra.mxu0 0.0
    %305 = vmatprep.subr.mxu0 0.0
    %306 = vmatpush1.xpose.msra.mxu0 0.0
    %307 = vmatprep.subr.mxu0 0.0
    %308 = vmatpush1.xpose.msra.mxu0 0.0
    %309 = vmatprep.subr.mxu0 0.0
    %310 = vmatpush1.xpose.msra.mxu0 0.0
    %311 = vmatprep.subr.mxu0 0.0
    %312 = vmatpush1.xpose.msra.mxu0 0.0
    %313 = vmatprep.subr.mxu0 0.0
    %314 = vmatpush1.xpose.msra.mxu0 0.0
    %315 = vmatprep.subr.mxu0 0.0
    %316 = vmatpush1.xpose.msra.mxu0 0.0
    %317 = vmatprep.subr.mxu0 0.0
    %318 = vmatpush1.xpose.msra.mxu0 0.0
    %319 = vmatprep.subr.mxu0 0.0
    %320 = vmatpush1.xpose.msra.mxu0 0.0
    %321 = vmatprep.mubr.f32.mxu0 0.0
    %322 = vmatmul.mubr.f32.gmra.mrb[0].mxu0 %v253
    %v323 = vpop.f32.mrb[0].mxu0
    %v324 = vadd.f32 %v154, %v323
    %v325 = vpop.f32.mrb[0].mxu0
    %326 = vdwg.mxu0
    %vm327 = vcmask 64512
    %v328 = vsel %vm327, %v246, -inf
    %329 = vmax.xlane.f32.xlu0 %v328
    %v330 = vpop.xlane.xlu0 %329
    %v331 = vsel %vm327, %v324, -inf
    %332 = vmax.xlane.f32.xlu0 %v331
    %v333 = vpop.xlane.xlu0 %332
    %v334 = vsub.f32 %v246, %v330
    %v335 = vsub.f32 %v324, %v333
    %v336 = vmul.f32 %v334, 1.442695
    %v337 = vpow.pop %v336
    %v338 = vmul.f32 %v335, 1.442695
    %v339 = vpow.pop %v338
    %v340 = vsel %vm327, %v337, 0.0
    %341 = vadd.xlane.f32.xlu0 %v340
    %v342 = vpop.xlane.xlu0 %341
    %v343 = vsel %vm327, %v339, 0.0
    %344 = vadd.xlane.f32.xlu0 %v343
    %v345 = vpop.xlane.xlu0 %344
    %v346 = vrcp.pop %v342
    %v347 = vrcp.pop %v345
    %v348 = vmul.f32 %v342, %v346
    %v349 = vmul.f32 %v345, %v347
    %v350 = vsub.f32 2.0, %v348
    %v351 = vsub.f32 2.0, %v349
    %v352 = vmul.f32 %v346, %v350
    %v353 = vmul.f32 %v347, %v351
    %v354 = vmul.f32 %v337, %v352
    %v355 = vmul.f32 %v339, %v353
    %vm356 = vcmp.ge.s32.totalorder %v152, 8
    %vm357 = vcmp.lt.s32.totalorder %v152, 16
    %vm358 = vmand %vm356, %vm357
    %v359 = vsel %vm358, 1, 0
    %v360 = vcvt.s32.f32 %v359
    %362 = vrot.lane.b32.xlu0 %v360, 32
    %v363 = vpop.permute.xlu0 %362
    %v365 = vmul.f32 %v139, %v363
    %v366 = vmul.f32 %v144, %v363
    %367 = vrot.lane.b32.xlu0 %v360, 64
    %v368 = vpop.permute.xlu0 %367
    %v370 = vmul.f32 %v139, %v368
    %v371 = vmul.f32 %v144, %v368
    %373 = vrot.lane.b32.xlu0 %v365, 96
    %v374 = vpop.permute.xlu0 %373
    %v375 = vsel %vm65, %v374, 0
    %377 = vmatprep.subr.mxu0 0.0
    %378 = vmatpush1.xpose.msra.mxu0 %v375
    %379 = vmatprep.subr.mxu0 0.0
    %380 = vmatpush1.xpose.msra.mxu0 0.0
    %381 = vmatprep.subr.mxu0 0.0
    %382 = vmatpush1.xpose.msra.mxu0 0.0
    %383 = vmatprep.subr.mxu0 0.0
    %384 = vmatpush1.xpose.msra.mxu0 0.0
    %385 = vmatprep.subr.mxu0 0.0
    %386 = vmatpush1.xpose.msra.mxu0 0.0
    %387 = vmatprep.subr.mxu0 0.0
    %388 = vmatpush1.xpose.msra.mxu0 0.0
    %389 = vmatprep.subr.mxu0 0.0
    %390 = vmatpush1.xpose.msra.mxu0 0.0
    %391 = vmatprep.subr.mxu0 0.0
    %392 = vmatpush1.xpose.msra.mxu0 0.0
    %393 = vmatprep.subr.mxu0 0.0
    %394 = vmatpush1.xpose.msra.mxu0 0.0
    %395 = vmatprep.subr.mxu0 0.0
    %396 = vmatpush1.xpose.msra.mxu0 0.0
    %397 = vmatprep.subr.mxu0 0.0
    %398 = vmatpush1.xpose.msra.mxu0 0.0
    %399 = vmatprep.subr.mxu0 0.0
    %400 = vmatpush1.xpose.msra.mxu0 0.0
    %401 = vmatprep.subr.mxu0 0.0
    %402 = vmatpush1.xpose.msra.mxu0 0.0
    %403 = vmatprep.subr.mxu0 0.0
    %404 = vmatpush1.xpose.msra.mxu0 0.0
    %405 = vmatprep.subr.mxu0 0.0
    %406 = vmatpush1.xpose.msra.mxu0 0.0
    %407 = vmatprep.subr.mxu0 0.0
    %408 = vmatpush1.xpose.msra.mxu0 0.0
    %409 = vmatprep.subr.mxu0 0.0
    %410 = vmatpush1.xpose.msra.mxu0 0.0
    %411 = vmatprep.subr.mxu0 0.0
    %412 = vmatpush1.xpose.msra.mxu0 0.0
    %413 = vmatprep.subr.mxu0 0.0
    %414 = vmatpush1.xpose.msra.mxu0 0.0
    %415 = vmatprep.subr.mxu0 0.0
    %416 = vmatpush1.xpose.msra.mxu0 0.0
    %417 = vmatprep.subr.mxu0 0.0
    %418 = vmatpush1.xpose.msra.mxu0 0.0
    %419 = vmatprep.subr.mxu0 0.0
    %420 = vmatpush1.xpose.msra.mxu0 0.0
    %421 = vmatprep.subr.mxu0 0.0
    %422 = vmatpush1.xpose.msra.mxu0 0.0
    %423 = vmatprep.subr.mxu0 0.0
    %424 = vmatpush1.xpose.msra.mxu0 0.0
    %425 = vmatprep.subr.mxu0 0.0
    %426 = vmatpush1.xpose.msra.mxu0 0.0
    %427 = vmatprep.subr.mxu0 0.0
    %428 = vmatpush1.xpose.msra.mxu0 0.0
    %429 = vmatprep.subr.mxu0 0.0
    %430 = vmatpush1.xpose.msra.mxu0 0.0
    %431 = vmatprep.subr.mxu0 0.0
    %432 = vmatpush1.xpose.msra.mxu0 0.0
    %433 = vmatprep.subr.mxu0 0.0
    %434 = vmatpush1.xpose.msra.mxu0 0.0
    %435 = vmatprep.subr.mxu0 0.0
    %436 = vmatpush1.xpose.msra.mxu0 0.0
    %437 = vmatprep.subr.mxu0 0.0
    %438 = vmatpush1.xpose.msra.mxu0 0.0
    %439 = vmatprep.subr.mxu0 0.0
    %440 = vmatpush1.xpose.msra.mxu0 0.0
    %441 = vmatprep.mubr.f32.mxu0 0.0
    %442 = vmatmul.mubr.f32.gmra.mrb[0].mxu0 %v175
    %v443 = vpop.f32.mrb[0].mxu0
    %v444 = vadd.f32 %v154, %v443
    %v445 = vpop.f32.mrb[0].mxu0
    %446 = vdwg.mxu0
    %448 = vrot.lane.b32.xlu0 %v366, 96
    %v449 = vpop.permute.xlu0 %448
    %v450 = vsel %vm65, %v449, 0
    %452 = vmatprep.subr.mxu0 0.0
    %453 = vmatpush1.xpose.msra.mxu0 %v450
    %454 = vmatprep.subr.mxu0 0.0
    %455 = vmatpush1.xpose.msra.mxu0 0.0
    %456 = vmatprep.subr.mxu0 0.0
    %457 = vmatpush1.xpose.msra.mxu0 0.0
    %458 = vmatprep.subr.mxu0 0.0
    %459 = vmatpush1.xpose.msra.mxu0 0.0
    %460 = vmatprep.subr.mxu0 0.0
    %461 = vmatpush1.xpose.msra.mxu0 0.0
    %462 = vmatprep.subr.mxu0 0.0
    %463 = vmatpush1.xpose.msra.mxu0 0.0
    %464 = vmatprep.subr.mxu0 0.0
    %465 = vmatpush1.xpose.msra.mxu0 0.0
    %466 = vmatprep.subr.mxu0 0.0
    %467 = vmatpush1.xpose.msra.mxu0 0.0
    %468 = vmatprep.subr.mxu0 0.0
    %469 = vmatpush1.xpose.msra.mxu0 0.0
    %470 = vmatprep.subr.mxu0 0.0
    %471 = vmatpush1.xpose.msra.mxu0 0.0
    %472 = vmatprep.subr.mxu0 0.0
    %473 = vmatpush1.xpose.msra.mxu0 0.0
    %474 = vmatprep.subr.mxu0 0.0
    %475 = vmatpush1.xpose.msra.mxu0 0.0
    %476 = vmatprep.subr.mxu0 0.0
    %477 = vmatpush1.xpose.msra.mxu0 0.0
    %478 = vmatprep.subr.mxu0 0.0
    %479 = vmatpush1.xpose.msra.mxu0 0.0
    %480 = vmatprep.subr.mxu0 0.0
    %481 = vmatpush1.xpose.msra.mxu0 0.0
    %482 = vmatprep.subr.mxu0 0.0
    %483 = vmatpush1.xpose.msra.mxu0 0.0
    %484 = vmatprep.subr.mxu0 0.0
    %485 = vmatpush1.xpose.msra.mxu0 0.0
    %486 = vmatprep.subr.mxu0 0.0
    %487 = vmatpush1.xpose.msra.mxu0 0.0
    %488 = vmatprep.subr.mxu0 0.0
    %489 = vmatpush1.xpose.msra.mxu0 0.0
    %490 = vmatprep.subr.mxu0 0.0
    %491 = vmatpush1.xpose.msra.mxu0 0.0
    %492 = vmatprep.subr.mxu0 0.0
    %493 = vmatpush1.xpose.msra.mxu0 0.0
    %494 = vmatprep.subr.mxu0 0.0
    %495 = vmatpush1.xpose.msra.mxu0 0.0
    %496 = vmatprep.subr.mxu0 0.0
    %497 = vmatpush1.xpose.msra.mxu0 0.0
    %498 = vmatprep.subr.mxu0 0.0
    %499 = vmatpush1.xpose.msra.mxu0 0.0
    %500 = vmatprep.subr.mxu0 0.0
    %501 = vmatpush1.xpose.msra.mxu0 0.0
    %502 = vmatprep.subr.mxu0 0.0
    %503 = vmatpush1.xpose.msra.mxu0 0.0
    %504 = vmatprep.subr.mxu0 0.0
    %505 = vmatpush1.xpose.msra.mxu0 0.0
    %506 = vmatprep.subr.mxu0 0.0
    %507 = vmatpush1.xpose.msra.mxu0 0.0
    %508 = vmatprep.subr.mxu0 0.0
    %509 = vmatpush1.xpose.msra.mxu0 0.0
    %510 = vmatprep.subr.mxu0 0.0
    %511 = vmatpush1.xpose.msra.mxu0 0.0
    %512 = vmatprep.subr.mxu0 0.0
    %513 = vmatpush1.xpose.msra.mxu0 0.0
    %514 = vmatprep.subr.mxu0 0.0
    %515 = vmatpush1.xpose.msra.mxu0 0.0
    %516 = vmatprep.mubr.f32.mxu0 0.0
    %517 = vmatmul.mubr.f32.gmra.mrb[0].mxu0 %v253
    %v518 = vpop.f32.mrb[0].mxu0
    %v519 = vadd.f32 %v154, %v518
    %v520 = vpop.f32.mrb[0].mxu0
    %521 = vdwg.mxu0
    %v522 = vsel %vm327, %v444, -inf
    %523 = vmax.xlane.f32.xlu0 %v522
    %v524 = vpop.xlane.xlu0 %523
    %v525 = vsel %vm327, %v519, -inf
    %526 = vmax.xlane.f32.xlu0 %v525
    %v527 = vpop.xlane.xlu0 %526
    %v528 = vsub.f32 %v444, %v524
    %v529 = vsub.f32 %v519, %v527
    %v530 = vmul.f32 %v528, 1.442695
    %v531 = vpow.pop %v530
    %v532 = vmul.f32 %v529, 1.442695
    %v533 = vpow.pop %v532
    %v534 = vsel %vm327, %v531, 0.0
    %535 = vadd.xlane.f32.xlu0 %v534
    %v536 = vpop.xlane.xlu0 %535
    %v537 = vsel %vm327, %v533, 0.0
    %538 = vadd.xlane.f32.xlu0 %v537
    %v539 = vpop.xlane.xlu0 %538
    %v540 = vrcp.pop %v536
    %v541 = vrcp.pop %v539
    %v542 = vmul.f32 %v536, %v540
    %v543 = vmul.f32 %v539, %v541
    %v544 = vsub.f32 2.0, %v542
    %v545 = vsub.f32 2.0, %v543
    %v546 = vmul.f32 %v540, %v544
    %v547 = vmul.f32 %v541, %v545
    %v548 = vmul.f32 %v531, %v546
    %v549 = vmul.f32 %v533, %v547
    %551 = vrot.lane.b32.xlu0 %v370, 64
    %v552 = vpop.permute.xlu0 %551
    %v555 = vsel %vm327, %v548, 0
    %557 = vmatprep.subr.mxu0 0.0
    %558 = vmatpush1.msra.mxu0 %v552
    %559 = vmatprep.subr.mxu0 0.0
    %560 = vmatpush1.msra.mxu0 0.0
    %561 = vmatprep.subr.mxu0 0.0
    %562 = vmatpush1.msra.mxu0 0.0
    %563 = vmatprep.subr.mxu0 0.0
    %564 = vmatpush1.msra.mxu0 0.0
    %565 = vmatprep.subr.mxu0 0.0
    %566 = vmatpush1.msra.mxu0 0.0
    %567 = vmatprep.subr.mxu0 0.0
    %568 = vmatpush1.msra.mxu0 0.0
    %569 = vmatprep.subr.mxu0 0.0
    %570 = vmatpush1.msra.mxu0 0.0
    %571 = vmatprep.subr.mxu0 0.0
    %572 = vmatpush1.msra.mxu0 0.0
    %573 = vmatprep.subr.mxu0 0.0
    %574 = vmatpush1.msra.mxu0 0.0
    %575 = vmatprep.subr.mxu0 0.0
    %576 = vmatpush1.msra.mxu0 0.0
    %577 = vmatprep.subr.mxu0 0.0
    %578 = vmatpush1.msra.mxu0 0.0
    %579 = vmatprep.subr.mxu0 0.0
    %580 = vmatpush1.msra.mxu0 0.0
    %581 = vmatprep.subr.mxu0 0.0
    %582 = vmatpush1.msra.mxu0 0.0
    %583 = vmatprep.subr.mxu0 0.0
    %584 = vmatpush1.msra.mxu0 0.0
    %585 = vmatprep.subr.mxu0 0.0
    %586 = vmatpush1.msra.mxu0 0.0
    %587 = vmatprep.subr.mxu0 0.0
    %588 = vmatpush1.msra.mxu0 0.0
    %589 = vmatprep.subr.mxu0 0.0
    %590 = vmatpush1.msra.mxu0 0.0
    %591 = vmatprep.subr.mxu0 0.0
    %592 = vmatpush1.msra.mxu0 0.0
    %593 = vmatprep.subr.mxu0 0.0
    %594 = vmatpush1.msra.mxu0 0.0
    %595 = vmatprep.subr.mxu0 0.0
    %596 = vmatpush1.msra.mxu0 0.0
    %597 = vmatprep.subr.mxu0 0.0
    %598 = vmatpush1.msra.mxu0 0.0
    %599 = vmatprep.subr.mxu0 0.0
    %600 = vmatpush1.msra.mxu0 0.0
    %601 = vmatprep.subr.mxu0 0.0
    %602 = vmatpush1.msra.mxu0 0.0
    %603 = vmatprep.subr.mxu0 0.0
    %604 = vmatpush1.msra.mxu0 0.0
    %605 = vmatprep.subr.mxu0 0.0
    %606 = vmatpush1.msra.mxu0 0.0
    %607 = vmatprep.subr.mxu0 0.0
    %608 = vmatpush1.msra.mxu0 0.0
    %609 = vmatprep.subr.mxu0 0.0
    %610 = vmatpush1.msra.mxu0 0.0
    %611 = vmatprep.subr.mxu0 0.0
    %612 = vmatpush1.msra.mxu0 0.0
    %613 = vmatprep.subr.mxu0 0.0
    %614 = vmatpush1.msra.mxu0 0.0
    %615 = vmatprep.subr.mxu0 0.0
    %616 = vmatpush1.msra.mxu0 0.0
    %617 = vmatprep.subr.mxu0 0.0
    %618 = vmatpush1.msra.mxu0 0.0
    %619 = vmatprep.subr.mxu0 0.0
    %620 = vmatpush1.msra.mxu0 0.0
    %621 = vmatprep.mubr.f32.mxu0 0.0
    %622 = vmatmul.mubr.f32.gmra.mrb[0].mxu0 %v555
    %v623 = vpop.f32.mrb[0].mxu0
    %v624 = vadd.f32 0.0, %v623
    %v625 = vpop.f32.mrb[0].mxu0
    %626 = vdwg.mxu0
    %628 = vrot.lane.b32.xlu0 %v371, 64
    %v629 = vpop.permute.xlu0 %628
    %v632 = vsel %vm327, %v549, 0
    %634 = vmatprep.subr.mxu0 0.0
    %635 = vmatpush1.msra.mxu0 %v629
    %636 = vmatprep.subr.mxu0 0.0
    %637 = vmatpush1.msra.mxu0 0.0
    %638 = vmatprep.subr.mxu0 0.0
    %639 = vmatpush1.msra.mxu0 0.0
    %640 = vmatprep.subr.mxu0 0.0
    %641 = vmatpush1.msra.mxu0 0.0
    %642 = vmatprep.subr.mxu0 0.0
    %643 = vmatpush1.msra.mxu0 0.0
    %644 = vmatprep.subr.mxu0 0.0
    %645 = vmatpush1.msra.mxu0 0.0
    %646 = vmatprep.subr.mxu0 0.0
    %647 = vmatpush1.msra.mxu0 0.0
    %648 = vmatprep.subr.mxu0 0.0
    %649 = vmatpush1.msra.mxu0 0.0
    %650 = vmatprep.subr.mxu0 0.0
    %651 = vmatpush1.msra.mxu0 0.0
    %652 = vmatprep.subr.mxu0 0.0
    %653 = vmatpush1.msra.mxu0 0.0
    %654 = vmatprep.subr.mxu0 0.0
    %655 = vmatpush1.msra.mxu0 0.0
    %656 = vmatprep.subr.mxu0 0.0
    %657 = vmatpush1.msra.mxu0 0.0
    %658 = vmatprep.subr.mxu0 0.0
    %659 = vmatpush1.msra.mxu0 0.0
    %660 = vmatprep.subr.mxu0 0.0
    %661 = vmatpush1.msra.mxu0 0.0
    %662 = vmatprep.subr.mxu0 0.0
    %663 = vmatpush1.msra.mxu0 0.0
    %664 = vmatprep.subr.mxu0 0.0
    %665 = vmatpush1.msra.mxu0 0.0
    %666 = vmatprep.subr.mxu0 0.0
    %667 = vmatpush1.msra.mxu0 0.0
    %668 = vmatprep.subr.mxu0 0.0
    %669 = vmatpush1.msra.mxu0 0.0
    %670 = vmatprep.subr.mxu0 0.0
    %671 = vmatpush1.msra.mxu0 0.0
    %672 = vmatprep.subr.mxu0 0.0
    %673 = vmatpush1.msra.mxu0 0.0
    %674 = vmatprep.subr.mxu0 0.0
    %675 = vmatpush1.msra.mxu0 0.0
    %676 = vmatprep.subr.mxu0 0.0
    %677 = vmatpush1.msra.mxu0 0.0
    %678 = vmatprep.subr.mxu0 0.0
    %679 = vmatpush1.msra.mxu0 0.0
    %680 = vmatprep.subr.mxu0 0.0
    %681 = vmatpush1.msra.mxu0 0.0
    %682 = vmatprep.subr.mxu0 0.0
    %683 = vmatpush1.msra.mxu0 0.0
    %684 = vmatprep.subr.mxu0 0.0
    %685 = vmatpush1.msra.mxu0 0.0
    %686 = vmatprep.subr.mxu0 0.0
    %687 = vmatpush1.msra.mxu0 0.0
    %688 = vmatprep.subr.mxu0 0.0
    %689 = vmatpush1.msra.mxu0 0.0
    %690 = vmatprep.subr.mxu0 0.0
    %691 = vmatpush1.msra.mxu0 0.0
    %692 = vmatprep.subr.mxu0 0.0
    %693 = vmatpush1.msra.mxu0 0.0
    %694 = vmatprep.subr.mxu0 0.0
    %695 = vmatpush1.msra.mxu0 0.0
    %696 = vmatprep.subr.mxu0 0.0
    %697 = vmatpush1.msra.mxu0 0.0
    %698 = vmatprep.mubr.f32.mxu0 0.0
    %699 = vmatmul.mubr.f32.gmra.mrb[0].mxu0 %v632
    %v700 = vpop.f32.mrb[0].mxu0
    %v701 = vadd.f32 0.0, %v700
    %v702 = vpop.f32.mrb[0].mxu0
    %703 = vdwg.mxu0
    %705 = vrot.lane.b32.xlu0 %v169, 64
    %v706 = vpop.permute.xlu0 %705
    %v709 = vsel %vm327, %v354, 0
    %711 = vmatprep.subr.mxu0 0.0
    %712 = vmatpush1.msra.mxu0 %v706
    %713 = vmatprep.subr.mxu0 0.0
    %714 = vmatpush1.msra.mxu0 0.0
    %715 = vmatprep.subr.mxu0 0.0
    %716 = vmatpush1.msra.mxu0 0.0
    %717 = vmatprep.subr.mxu0 0.0
    %718 = vmatpush1.msra.mxu0 0.0
    %719 = vmatprep.subr.mxu0 0.0
    %720 = vmatpush1.msra.mxu0 0.0
    %721 = vmatprep.subr.mxu0 0.0
    %722 = vmatpush1.msra.mxu0 0.0
    %723 = vmatprep.subr.mxu0 0.0
    %724 = vmatpush1.msra.mxu0 0.0
    %725 = vmatprep.subr.mxu0 0.0
    %726 = vmatpush1.msra.mxu0 0.0
    %727 = vmatprep.subr.mxu0 0.0
    %728 = vmatpush1.msra.mxu0 0.0
    %729 = vmatprep.subr.mxu0 0.0
    %730 = vmatpush1.msra.mxu0 0.0
    %731 = vmatprep.subr.mxu0 0.0
    %732 = vmatpush1.msra.mxu0 0.0
    %733 = vmatprep.subr.mxu0 0.0
    %734 = vmatpush1.msra.mxu0 0.0
    %735 = vmatprep.subr.mxu0 0.0
    %736 = vmatpush1.msra.mxu0 0.0
    %737 = vmatprep.subr.mxu0 0.0
    %738 = vmatpush1.msra.mxu0 0.0
    %739 = vmatprep.subr.mxu0 0.0
    %740 = vmatpush1.msra.mxu0 0.0
    %741 = vmatprep.subr.mxu0 0.0
    %742 = vmatpush1.msra.mxu0 0.0
    %743 = vmatprep.subr.mxu0 0.0
    %744 = vmatpush1.msra.mxu0 0.0
    %745 = vmatprep.subr.mxu0 0.0
    %746 = vmatpush1.msra.mxu0 0.0
    %747 = vmatprep.subr.mxu0 0.0
    %748 = vmatpush1.msra.mxu0 0.0
    %749 = vmatprep.subr.mxu0 0.0
    %750 = vmatpush1.msra.mxu0 0.0
    %751 = vmatprep.subr.mxu0 0.0
    %752 = vmatpush1.msra.mxu0 0.0
    %753 = vmatprep.subr.mxu0 0.0
    %754 = vmatpush1.msra.mxu0 0.0
    %755 = vmatprep.subr.mxu0 0.0
    %756 = vmatpush1.msra.mxu0 0.0
    %757 = vmatprep.subr.mxu0 0.0
    %758 = vmatpush1.msra.mxu0 0.0
    %759 = vmatprep.subr.mxu0 0.0
    %760 = vmatpush1.msra.mxu0 0.0
    %761 = vmatprep.subr.mxu0 0.0
    %762 = vmatpush1.msra.mxu0 0.0
    %763 = vmatprep.subr.mxu0 0.0
    %764 = vmatpush1.msra.mxu0 0.0
    %765 = vmatprep.subr.mxu0 0.0
    %766 = vmatpush1.msra.mxu0 0.0
    %767 = vmatprep.subr.mxu0 0.0
    %768 = vmatpush1.msra.mxu0 0.0
    %769 = vmatprep.subr.mxu0 0.0
    %770 = vmatpush1.msra.mxu0 0.0
    %771 = vmatprep.subr.mxu0 0.0
    %772 = vmatpush1.msra.mxu0 0.0
    %773 = vmatprep.subr.mxu0 0.0
    %774 = vmatpush1.msra.mxu0 0.0
    %775 = vmatprep.mubr.f32.mxu0 0.0
    %776 = vmatmul.mubr.f32.gmra.mrb[0].mxu0 %v709
    %v777 = vpop.f32.mrb[0].mxu0
    %v778 = vadd.f32 %v624, %v777
    %v779 = vpop.f32.mrb[0].mxu0
    %780 = vdwg.mxu0
    %782 = vrot.lane.b32.xlu0 %v170, 64
    %v783 = vpop.permute.xlu0 %782
    %v786 = vsel %vm327, %v355, 0
    %788 = vmatprep.subr.mxu0 0.0
    %789 = vmatpush1.msra.mxu0 %v783
    %790 = vmatprep.subr.mxu0 0.0
    %791 = vmatpush1.msra.mxu0 0.0
    %792 = vmatprep.subr.mxu0 0.0
    %793 = vmatpush1.msra.mxu0 0.0
    %794 = vmatprep.subr.mxu0 0.0
    %795 = vmatpush1.msra.mxu0 0.0
    %796 = vmatprep.subr.mxu0 0.0
    %797 = vmatpush1.msra.mxu0 0.0
    %798 = vmatprep.subr.mxu0 0.0
    %799 = vmatpush1.msra.mxu0 0.0
    %800 = vmatprep.subr.mxu0 0.0
    %801 = vmatpush1.msra.mxu0 0.0
    %802 = vmatprep.subr.mxu0 0.0
    %803 = vmatpush1.msra.mxu0 0.0
    %804 = vmatprep.subr.mxu0 0.0
    %805 = vmatpush1.msra.mxu0 0.0
    %806 = vmatprep.subr.mxu0 0.0
    %807 = vmatpush1.msra.mxu0 0.0
    %808 = vmatprep.subr.mxu0 0.0
    %809 = vmatpush1.msra.mxu0 0.0
    %810 = vmatprep.subr.mxu0 0.0
    %811 = vmatpush1.msra.mxu0 0.0
    %812 = vmatprep.subr.mxu0 0.0
    %813 = vmatpush1.msra.mxu0 0.0
    %814 = vmatprep.subr.mxu0 0.0
    %815 = vmatpush1.msra.mxu0 0.0
    %816 = vmatprep.subr.mxu0 0.0
    %817 = vmatpush1.msra.mxu0 0.0
    %818 = vmatprep.subr.mxu0 0.0
    %819 = vmatpush1.msra.mxu0 0.0
    %820 = vmatprep.subr.mxu0 0.0
    %821 = vmatpush1.msra.mxu0 0.0
    %822 = vmatprep.subr.mxu0 0.0
    %823 = vmatpush1.msra.mxu0 0.0
    %824 = vmatprep.subr.mxu0 0.0
    %825 = vmatpush1.msra.mxu0 0.0
    %826 = vmatprep.subr.mxu0 0.0
    %827 = vmatpush1.msra.mxu0 0.0
    %828 = vmatprep.subr.mxu0 0.0
    %829 = vmatpush1.msra.mxu0 0.0
    %830 = vmatprep.subr.mxu0 0.0
    %831 = vmatpush1.msra.mxu0 0.0
    %832 = vmatprep.subr.mxu0 0.0
    %833 = vmatpush1.msra.mxu0 0.0
    %834 = vmatprep.subr.mxu0 0.0
    %835 = vmatpush1.msra.mxu0 0.0
    %836 = vmatprep.subr.mxu0 0.0
    %837 = vmatpush1.msra.mxu0 0.0
    %838 = vmatprep.subr.mxu0 0.0
    %839 = vmatpush1.msra.mxu0 0.0
    %840 = vmatprep.subr.mxu0 0.0
    %841 = vmatpush1.msra.mxu0 0.0
    %842 = vmatprep.subr.mxu0 0.0
    %843 = vmatpush1.msra.mxu0 0.0
    %844 = vmatprep.subr.mxu0 0.0
    %845 = vmatpush1.msra.mxu0 0.0
    %846 = vmatprep.subr.mxu0 0.0
    %847 = vmatpush1.msra.mxu0 0.0
    %848 = vmatprep.subr.mxu0 0.0
    %849 = vmatpush1.msra.mxu0 0.0
    %850 = vmatprep.subr.mxu0 0.0
    %851 = vmatpush1.msra.mxu0 0.0
    %852 = vmatprep.mubr.f32.mxu0 0.0
    %853 = vmatmul.mubr.f32.gmra.mrb[0].mxu0 %v786
    %v854 = vpop.f32.mrb[0].mxu0
    %v855 = vadd.f32 %v701, %v854
    %v856 = vpop.f32.mrb[0].mxu0
    %857 = vdwg.mxu0
    %vm858 = vcmp.ge.s32.totalorder %v152, 16
    %vm859 = vcmp.lt.s32.totalorder %v152, 24
    %vm860 = vmand %vm858, %vm859
    %v861 = vsel %vm860, 1, 0
    %v862 = vcvt.s32.f32 %v861
    %864 = vrot.lane.b32.xlu0 %v862, 32
    %v865 = vpop.permute.xlu0 %864
    %v867 = vmul.f32 %v139, %v865
    %v868 = vmul.f32 %v144, %v865
    %869 = vrot.lane.b32.xlu0 %v862, 64
    %v870 = vpop.permute.xlu0 %869
    %v872 = vmul.f32 %v139, %v870
    %v873 = vmul.f32 %v144, %v870
    %875 = vrot.lane.b32.xlu0 %v867, 96
    %v876 = vpop.permute.xlu0 %875
    %v877 = vsel %vm65, %v876, 0
    %879 = vmatprep.subr.mxu0 0.0
    %880 = vmatpush1.xpose.msra.mxu0 %v877
    %881 = vmatprep.subr.mxu0 0.0
    %882 = vmatpush1.xpose.msra.mxu0 0.0
    %883 = vmatprep.subr.mxu0 0.0
    %884 = vmatpush1.xpose.msra.mxu0 0.0
    %885 = vmatprep.subr.mxu0 0.0
    %886 = vmatpush1.xpose.msra.mxu0 0.0
    %887 = vmatprep.subr.mxu0 0.0
    %888 = vmatpush1.xpose.msra.mxu0 0.0
    %889 = vmatprep.subr.mxu0 0.0
    %890 = vmatpush1.xpose.msra.mxu0 0.0
    %891 = vmatprep.subr.mxu0 0.0
    %892 = vmatpush1.xpose.msra.mxu0 0.0
    %893 = vmatprep.subr.mxu0 0.0
    %894 = vmatpush1.xpose.msra.mxu0 0.0
    %895 = vmatprep.subr.mxu0 0.0
    %896 = vmatpush1.xpose.msra.mxu0 0.0
    %897 = vmatprep.subr.mxu0 0.0
    %898 = vmatpush1.xpose.msra.mxu0 0.0
    %899 = vmatprep.subr.mxu0 0.0
    %900 = vmatpush1.xpose.msra.mxu0 0.0
    %901 = vmatprep.subr.mxu0 0.0
    %902 = vmatpush1.xpose.msra.mxu0 0.0
    %903 = vmatprep.subr.mxu0 0.0
    %904 = vmatpush1.xpose.msra.mxu0 0.0
    %905 = vmatprep.subr.mxu0 0.0
    %906 = vmatpush1.xpose.msra.mxu0 0.0
    %907 = vmatprep.subr.mxu0 0.0
    %908 = vmatpush1.xpose.msra.mxu0 0.0
    %909 = vmatprep.subr.mxu0 0.0
    %910 = vmatpush1.xpose.msra.mxu0 0.0
    %911 = vmatprep.subr.mxu0 0.0
    %912 = vmatpush1.xpose.msra.mxu0 0.0
    %913 = vmatprep.subr.mxu0 0.0
    %914 = vmatpush1.xpose.msra.mxu0 0.0
    %915 = vmatprep.subr.mxu0 0.0
    %916 = vmatpush1.xpose.msra.mxu0 0.0
    %917 = vmatprep.subr.mxu0 0.0
    %918 = vmatpush1.xpose.msra.mxu0 0.0
    %919 = vmatprep.subr.mxu0 0.0
    %920 = vmatpush1.xpose.msra.mxu0 0.0
    %921 = vmatprep.subr.mxu0 0.0
    %922 = vmatpush1.xpose.msra.mxu0 0.0
    %923 = vmatprep.subr.mxu0 0.0
    %924 = vmatpush1.xpose.msra.mxu0 0.0
    %925 = vmatprep.subr.mxu0 0.0
    %926 = vmatpush1.xpose.msra.mxu0 0.0
    %927 = vmatprep.subr.mxu0 0.0
    %928 = vmatpush1.xpose.msra.mxu0 0.0
    %929 = vmatprep.subr.mxu0 0.0
    %930 = vmatpush1.xpose.msra.mxu0 0.0
    %931 = vmatprep.subr.mxu0 0.0
    %932 = vmatpush1.xpose.msra.mxu0 0.0
    %933 = vmatprep.subr.mxu0 0.0
    %934 = vmatpush1.xpose.msra.mxu0 0.0
    %935 = vmatprep.subr.mxu0 0.0
    %936 = vmatpush1.xpose.msra.mxu0 0.0
    %937 = vmatprep.subr.mxu0 0.0
    %938 = vmatpush1.xpose.msra.mxu0 0.0
    %939 = vmatprep.subr.mxu0 0.0
    %940 = vmatpush1.xpose.msra.mxu0 0.0
    %941 = vmatprep.subr.mxu0 0.0
    %942 = vmatpush1.xpose.msra.mxu0 0.0
    %943 = vmatprep.mubr.f32.mxu0 0.0
    %944 = vmatmul.mubr.f32.gmra.mrb[0].mxu0 %v175
    %v945 = vpop.f32.mrb[0].mxu0
    %v946 = vadd.f32 %v154, %v945
    %v947 = vpop.f32.mrb[0].mxu0
    %948 = vdwg.mxu0
    %950 = vrot.lane.b32.xlu0 %v868, 96
    %v951 = vpop.permute.xlu0 %950
    %v952 = vsel %vm65, %v951, 0
    %954 = vmatprep.subr.mxu0 0.0
    %955 = vmatpush1.xpose.msra.mxu0 %v952
    %956 = vmatprep.subr.mxu0 0.0
    %957 = vmatpush1.xpose.msra.mxu0 0.0
    %958 = vmatprep.subr.mxu0 0.0
    %959 = vmatpush1.xpose.msra.mxu0 0.0
    %960 = vmatprep.subr.mxu0 0.0
    %961 = vmatpush1.xpose.msra.mxu0 0.0
    %962 = vmatprep.subr.mxu0 0.0
    %963 = vmatpush1.xpose.msra.mxu0 0.0
    %964 = vmatprep.subr.mxu0 0.0
    %965 = vmatpush1.xpose.msra.mxu0 0.0
    %966 = vmatprep.subr.mxu0 0.0
    %967 = vmatpush1.xpose.msra.mxu0 0.0
    %968 = vmatprep.subr.mxu0 0.0
    %969 = vmatpush1.xpose.msra.mxu0 0.0
    %970 = vmatprep.subr.mxu0 0.0
    %971 = vmatpush1.xpose.msra.mxu0 0.0
    %972 = vmatprep.subr.mxu0 0.0
    %973 = vmatpush1.xpose.msra.mxu0 0.0
    %974 = vmatprep.subr.mxu0 0.0
    %975 = vmatpush1.xpose.msra.mxu0 0.0
    %976 = vmatprep.subr.mxu0 0.0
    %977 = vmatpush1.xpose.msra.mxu0 0.0
    %978 = vmatprep.subr.mxu0 0.0
    %979 = vmatpush1.xpose.msra.mxu0 0.0
    %980 = vmatprep.subr.mxu0 0.0
    %981 = vmatpush1.xpose.msra.mxu0 0.0
    %982 = vmatprep.subr.mxu0 0.0
    %983 = vmatpush1.xpose.msra.mxu0 0.0
    %984 = vmatprep.subr.mxu0 0.0
    %985 = vmatpush1.xpose.msra.mxu0 0.0
    %986 = vmatprep.subr.mxu0 0.0
    %987 = vmatpush1.xpose.msra.mxu0 0.0
    %988 = vmatprep.subr.mxu0 0.0
    %989 = vmatpush1.xpose.msra.mxu0 0.0
    %990 = vmatprep.subr.mxu0 0.0
    %991 = vmatpush1.xpose.msra.mxu0 0.0
    %992 = vmatprep.subr.mxu0 0.0
    %993 = vmatpush1.xpose.msra.mxu0 0.0
    %994 = vmatprep.subr.mxu0 0.0
    %995 = vmatpush1.xpose.msra.mxu0 0.0
    %996 = vmatprep.subr.mxu0 0.0
    %997 = vmatpush1.xpose.msra.mxu0 0.0
    %998 = vmatprep.subr.mxu0 0.0
    %999 = vmatpush1.xpose.msra.mxu0 0.0
    %1000 = vmatprep.subr.mxu0 0.0
    %1001 = vmatpush1.xpose.msra.mxu0 0.0
    %1002 = vmatprep.subr.mxu0 0.0
    %1003 = vmatpush1.xpose.msra.mxu0 0.0
    %1004 = vmatprep.subr.mxu0 0.0
    %1005 = vmatpush1.xpose.msra.mxu0 0.0
    %1006 = vmatprep.subr.mxu0 0.0
    %1007 = vmatpush1.xpose.msra.mxu0 0.0
    %1008 = vmatprep.subr.mxu0 0.0
    %1009 = vmatpush1.xpose.msra.mxu0 0.0
    %1010 = vmatprep.subr.mxu0 0.0
    %1011 = vmatpush1.xpose.msra.mxu0 0.0
    %1012 = vmatprep.subr.mxu0 0.0
    %1013 = vmatpush1.xpose.msra.mxu0 0.0
    %1014 = vmatprep.subr.mxu0 0.0
    %1015 = vmatpush1.xpose.msra.mxu0 0.0
    %1016 = vmatprep.subr.mxu0 0.0
    %1017 = vmatpush1.xpose.msra.mxu0 0.0
    %1018 = vmatprep.mubr.f32.mxu0 0.0
    %1019 = vmatmul.mubr.f32.gmra.mrb[0].mxu0 %v253
    %v1020 = vpop.f32.mrb[0].mxu0
    %v1021 = vadd.f32 %v154, %v1020
    %v1022 = vpop.f32.mrb[0].mxu0
    %1023 = vdwg.mxu0
    %v1024 = vsel %vm327, %v946, -inf
    %1025 = vmax.xlane.f32.xlu0 %v1024
    %v1026 = vpop.xlane.xlu0 %1025
    %v1027 = vsel %vm327, %v1021, -inf
    %1028 = vmax.xlane.f32.xlu0 %v1027
    %v1029 = vpop.xlane.xlu0 %1028
    %v1030 = vsub.f32 %v946, %v1026
    %v1031 = vsub.f32 %v1021, %v1029
    %v1032 = vmul.f32 %v1030, 1.442695
    %v1033 = vpow.pop %v1032
    %v1034 = vmul.f32 %v1031, 1.442695
    %v1035 = vpow.pop %v1034
    %v1036 = vsel %vm327, %v1033, 0.0
    %1037 = vadd.xlane.f32.xlu0 %v1036
    %v1038 = vpop.xlane.xlu0 %1037
    %v1039 = vsel %vm327, %v1035, 0.0
    %1040 = vadd.xlane.f32.xlu0 %v1039
    %v1041 = vpop.xlane.xlu0 %1040
    %v1042 = vrcp.pop %v1038
    %v1043 = vrcp.pop %v1041
    %v1044 = vmul.f32 %v1038, %v1042
    %v1045 = vmul.f32 %v1041, %v1043
    %v1046 = vsub.f32 2.0, %v1044
    %v1047 = vsub.f32 2.0, %v1045
    %v1048 = vmul.f32 %v1042, %v1046
    %v1049 = vmul.f32 %v1043, %v1047
    %v1050 = vmul.f32 %v1033, %v1048
    %v1051 = vmul.f32 %v1035, %v1049
    %1053 = vrot.lane.b32.xlu0 %v872, 64
    %v1054 = vpop.permute.xlu0 %1053
    %v1057 = vsel %vm327, %v1050, 0
    %1059 = vmatprep.subr.mxu0 0.0
    %1060 = vmatpush1.msra.mxu0 %v1054
    %1061 = vmatprep.subr.mxu0 0.0
    %1062 = vmatpush1.msra.mxu0 0.0
    %1063 = vmatprep.subr.mxu0 0.0
    %1064 = vmatpush1.msra.mxu0 0.0
    %1065 = vmatprep.subr.mxu0 0.0
    %1066 = vmatpush1.msra.mxu0 0.0
    %1067 = vmatprep.subr.mxu0 0.0
    %1068 = vmatpush1.msra.mxu0 0.0
    %1069 = vmatprep.subr.mxu0 0.0
    %1070 = vmatpush1.msra.mxu0 0.0
    %1071 = vmatprep.subr.mxu0 0.0
    %1072 = vmatpush1.msra.mxu0 0.0
    %1073 = vmatprep.subr.mxu0 0.0
    %1074 = vmatpush1.msra.mxu0 0.0
    %1075 = vmatprep.subr.mxu0 0.0
    %1076 = vmatpush1.msra.mxu0 0.0
    %1077 = vmatprep.subr.mxu0 0.0
    %1078 = vmatpush1.msra.mxu0 0.0
    %1079 = vmatprep.subr.mxu0 0.0
    %1080 = vmatpush1.msra.mxu0 0.0
    %1081 = vmatprep.subr.mxu0 0.0
    %1082 = vmatpush1.msra.mxu0 0.0
    %1083 = vmatprep.subr.mxu0 0.0
    %1084 = vmatpush1.msra.mxu0 0.0
    %1085 = vmatprep.subr.mxu0 0.0
    %1086 = vmatpush1.msra.mxu0 0.0
    %1087 = vmatprep.subr.mxu0 0.0
    %1088 = vmatpush1.msra.mxu0 0.0
    %1089 = vmatprep.subr.mxu0 0.0
    %1090 = vmatpush1.msra.mxu0 0.0
    %1091 = vmatprep.subr.mxu0 0.0
    %1092 = vmatpush1.msra.mxu0 0.0
    %1093 = vmatprep.subr.mxu0 0.0
    %1094 = vmatpush1.msra.mxu0 0.0
    %1095 = vmatprep.subr.mxu0 0.0
    %1096 = vmatpush1.msra.mxu0 0.0
    %1097 = vmatprep.subr.mxu0 0.0
    %1098 = vmatpush1.msra.mxu0 0.0
    %1099 = vmatprep.subr.mxu0 0.0
    %1100 = vmatpush1.msra.mxu0 0.0
    %1101 = vmatprep.subr.mxu0 0.0
    %1102 = vmatpush1.msra.mxu0 0.0
    %1103 = vmatprep.subr.mxu0 0.0
    %1104 = vmatpush1.msra.mxu0 0.0
    %1105 = vmatprep.subr.mxu0 0.0
    %1106 = vmatpush1.msra.mxu0 0.0
    %1107 = vmatprep.subr.mxu0 0.0
    %1108 = vmatpush1.msra.mxu0 0.0
    %1109 = vmatprep.subr.mxu0 0.0
    %1110 = vmatpush1.msra.mxu0 0.0
    %1111 = vmatprep.subr.mxu0 0.0
    %1112 = vmatpush1.msra.mxu0 0.0
    %1113 = vmatprep.subr.mxu0 0.0
    %1114 = vmatpush1.msra.mxu0 0.0
    %1115 = vmatprep.subr.mxu0 0.0
    %1116 = vmatpush1.msra.mxu0 0.0
    %1117 = vmatprep.subr.mxu0 0.0
    %1118 = vmatpush1.msra.mxu0 0.0
    %1119 = vmatprep.subr.mxu0 0.0
    %1120 = vmatpush1.msra.mxu0 0.0
    %1121 = vmatprep.subr.mxu0 0.0
    %1122 = vmatpush1.msra.mxu0 0.0
    %1123 = vmatprep.mubr.f32.mxu0 0.0
    %1124 = vmatmul.mubr.f32.gmra.mrb[0].mxu0 %v1057
    %v1125 = vpop.f32.mrb[0].mxu0
    %v1126 = vadd.f32 0.0, %v1125
    %v1127 = vpop.f32.mrb[0].mxu0
    %1128 = vdwg.mxu0
    %1130 = vrot.lane.b32.xlu0 %v873, 64
    %v1131 = vpop.permute.xlu0 %1130
    %v1134 = vsel %vm327, %v1051, 0
    %1136 = vmatprep.subr.mxu0 0.0
    %1137 = vmatpush1.msra.mxu0 %v1131
    %1138 = vmatprep.subr.mxu0 0.0
    %1139 = vmatpush1.msra.mxu0 0.0
    %1140 = vmatprep.subr.mxu0 0.0
    %1141 = vmatpush1.msra.mxu0 0.0
    %1142 = vmatprep.subr.mxu0 0.0
    %1143 = vmatpush1.msra.mxu0 0.0
    %1144 = vmatprep.subr.mxu0 0.0
    %1145 = vmatpush1.msra.mxu0 0.0
    %1146 = vmatprep.subr.mxu0 0.0
    %1147 = vmatpush1.msra.mxu0 0.0
    %1148 = vmatprep.subr.mxu0 0.0
    %1149 = vmatpush1.msra.mxu0 0.0
    %1150 = vmatprep.subr.mxu0 0.0
    %1151 = vmatpush1.msra.mxu0 0.0
    %1152 = vmatprep.subr.mxu0 0.0
    %1153 = vmatpush1.msra.mxu0 0.0
    %1154 = vmatprep.subr.mxu0 0.0
    %1155 = vmatpush1.msra.mxu0 0.0
    %1156 = vmatprep.subr.mxu0 0.0
    %1157 = vmatpush1.msra.mxu0 0.0
    %1158 = vmatprep.subr.mxu0 0.0
    %1159 = vmatpush1.msra.mxu0 0.0
    %1160 = vmatprep.subr.mxu0 0.0
    %1161 = vmatpush1.msra.mxu0 0.0
    %1162 = vmatprep.subr.mxu0 0.0
    %1163 = vmatpush1.msra.mxu0 0.0
    %1164 = vmatprep.subr.mxu0 0.0
    %1165 = vmatpush1.msra.mxu0 0.0
    %1166 = vmatprep.subr.mxu0 0.0
    %1167 = vmatpush1.msra.mxu0 0.0
    %1168 = vmatprep.subr.mxu0 0.0
    %1169 = vmatpush1.msra.mxu0 0.0
    %1170 = vmatprep.subr.mxu0 0.0
    %1171 = vmatpush1.msra.mxu0 0.0
    %1172 = vmatprep.subr.mxu0 0.0
    %1173 = vmatpush1.msra.mxu0 0.0
    %1174 = vmatprep.subr.mxu0 0.0
    %1175 = vmatpush1.msra.mxu0 0.0
    %1176 = vmatprep.subr.mxu0 0.0
    %1177 = vmatpush1.msra.mxu0 0.0
    %1178 = vmatprep.subr.mxu0 0.0
    %1179 = vmatpush1.msra.mxu0 0.0
    %1180 = vmatprep.subr.mxu0 0.0
    %1181 = vmatpush1.msra.mxu0 0.0
    %1182 = vmatprep.subr.mxu0 0.0
    %1183 = vmatpush1.msra.mxu0 0.0
    %1184 = vmatprep.subr.mxu0 0.0
    %1185 = vmatpush1.msra.mxu0 0.0
    %1186 = vmatprep.subr.mxu0 0.0
    %1187 = vmatpush1.msra.mxu0 0.0
    %1188 = vmatprep.subr.mxu0 0.0
    %1189 = vmatpush1.msra.mxu0 0.0
    %1190 = vmatprep.subr.mxu0 0.0
    %1191 = vmatpush1.msra.mxu0 0.0
    %1192 = vmatprep.subr.mxu0 0.0
    %1193 = vmatpush1.msra.mxu0 0.0
    %1194 = vmatprep.subr.mxu0 0.0
    %1195 = vmatpush1.msra.mxu0 0.0
    %1196 = vmatprep.subr.mxu0 0.0
    %1197 = vmatpush1.msra.mxu0 0.0
    %1198 = vmatprep.subr.mxu0 0.0
    %1199 = vmatpush1.msra.mxu0 0.0
    %1200 = vmatprep.mubr.f32.mxu0 0.0
    %1201 = vmatmul.mubr.f32.gmra.mrb[0].mxu0 %v1134
    %v1202 = vpop.f32.mrb[0].mxu0
    %v1203 = vadd.f32 0.0, %v1202
    %v1204 = vpop.f32.mrb[0].mxu0
    %1205 = vdwg.mxu0
    %v1206 = vadd.f32 %v778, %v1126
    %v1207 = vadd.f32 %v855, %v1203
    %vm1208 = vcmp.ge.s32.totalorder %v152, 24
    %vm1209 = vcmp.lt.s32.totalorder %v152, 32
    %vm1210 = vmand %vm1208, %vm1209
    %v1211 = vsel %vm1210, 1, 0
    %v1212 = vcvt.s32.f32 %v1211
    %1214 = vrot.lane.b32.xlu0 %v1212, 32
    %v1215 = vpop.permute.xlu0 %1214
    %v1217 = vmul.f32 %v139, %v1215
    %v1218 = vmul.f32 %v144, %v1215
    %1219 = vrot.lane.b32.xlu0 %v1212, 64
    %v1220 = vpop.permute.xlu0 %1219
    %v1222 = vmul.f32 %v139, %v1220
    %v1223 = vmul.f32 %v144, %v1220
    %1225 = vrot.lane.b32.xlu0 %v1217, 96
    %v1226 = vpop.permute.xlu0 %1225
    %v1227 = vsel %vm65, %v1226, 0
    %1229 = vmatprep.subr.mxu0 0.0
    %1230 = vmatpush1.xpose.msra.mxu0 %v1227
    %1231 = vmatprep.subr.mxu0 0.0
    %1232 = vmatpush1.xpose.msra.mxu0 0.0
    %1233 = vmatprep.subr.mxu0 0.0
    %1234 = vmatpush1.xpose.msra.mxu0 0.0
    %1235 = vmatprep.subr.mxu0 0.0
    %1236 = vmatpush1.xpose.msra.mxu0 0.0
    %1237 = vmatprep.subr.mxu0 0.0
    %1238 = vmatpush1.xpose.msra.mxu0 0.0
    %1239 = vmatprep.subr.mxu0 0.0
    %1240 = vmatpush1.xpose.msra.mxu0 0.0
    %1241 = vmatprep.subr.mxu0 0.0
    %1242 = vmatpush1.xpose.msra.mxu0 0.0
    %1243 = vmatprep.subr.mxu0 0.0
    %1244 = vmatpush1.xpose.msra.mxu0 0.0
    %1245 = vmatprep.subr.mxu0 0.0
    %1246 = vmatpush1.xpose.msra.mxu0 0.0
    %1247 = vmatprep.subr.mxu0 0.0
    %1248 = vmatpush1.xpose.msra.mxu0 0.0
    %1249 = vmatprep.subr.mxu0 0.0
    %1250 = vmatpush1.xpose.msra.mxu0 0.0
    %1251 = vmatprep.subr.mxu0 0.0
    %1252 = vmatpush1.xpose.msra.mxu0 0.0
    %1253 = vmatprep.subr.mxu0 0.0
    %1254 = vmatpush1.xpose.msra.mxu0 0.0
    %1255 = vmatprep.subr.mxu0 0.0
    %1256 = vmatpush1.xpose.msra.mxu0 0.0
    %1257 = vmatprep.subr.mxu0 0.0
    %1258 = vmatpush1.xpose.msra.mxu0 0.0
    %1259 = vmatprep.subr.mxu0 0.0
    %1260 = vmatpush1.xpose.msra.mxu0 0.0
    %1261 = vmatprep.subr.mxu0 0.0
    %1262 = vmatpush1.xpose.msra.mxu0 0.0
    %1263 = vmatprep.subr.mxu0 0.0
    %1264 = vmatpush1.xpose.msra.mxu0 0.0
    %1265 = vmatprep.subr.mxu0 0.0
    %1266 = vmatpush1.xpose.msra.mxu0 0.0
    %1267 = vmatprep.subr.mxu0 0.0
    %1268 = vmatpush1.xpose.msra.mxu0 0.0
    %1269 = vmatprep.subr.mxu0 0.0
    %1270 = vmatpush1.xpose.msra.mxu0 0.0
    %1271 = vmatprep.subr.mxu0 0.0
    %1272 = vmatpush1.xpose.msra.mxu0 0.0
    %1273 = vmatprep.subr.mxu0 0.0
    %1274 = vmatpush1.xpose.msra.mxu0 0.0
    %1275 = vmatprep.subr.mxu0 0.0
    %1276 = vmatpush1.xpose.msra.mxu0 0.0
    %1277 = vmatprep.subr.mxu0 0.0
    %1278 = vmatpush1.xpose.msra.mxu0 0.0
    %1279 = vmatprep.subr.mxu0 0.0
    %1280 = vmatpush1.xpose.msra.mxu0 0.0
    %1281 = vmatprep.subr.mxu0 0.0
    %1282 = vmatpush1.xpose.msra.mxu0 0.0
    %1283 = vmatprep.subr.mxu0 0.0
    %1284 = vmatpush1.xpose.msra.mxu0 0.0
    %1285 = vmatprep.subr.mxu0 0.0
    %1286 = vmatpush1.xpose.msra.mxu0 0.0
    %1287 = vmatprep.subr.mxu0 0.0
    %1288 = vmatpush1.xpose.msra.mxu0 0.0
    %1289 = vmatprep.subr.mxu0 0.0
    %1290 = vmatpush1.xpose.msra.mxu0 0.0
    %1291 = vmatprep.subr.mxu0 0.0
    %1292 = vmatpush1.xpose.msra.mxu0 0.0
    %1293 = vmatprep.mubr.f32.mxu0 0.0
    %1294 = vmatmul.mubr.f32.gmra.mrb[0].mxu0 %v175
    %v1295 = vpop.f32.mrb[0].mxu0
    %v1296 = vadd.f32 %v154, %v1295
    %v1297 = vpop.f32.mrb[0].mxu0
    %1298 = vdwg.mxu0
    %1300 = vrot.lane.b32.xlu0 %v1218, 96
    %v1301 = vpop.permute.xlu0 %1300
    %v1302 = vsel %vm65, %v1301, 0
    %1304 = vmatprep.subr.mxu0 0.0
    %1305 = vmatpush1.xpose.msra.mxu0 %v1302
    %1306 = vmatprep.subr.mxu0 0.0
    %1307 = vmatpush1.xpose.msra.mxu0 0.0
    %1308 = vmatprep.subr.mxu0 0.0
    %1309 = vmatpush1.xpose.msra.mxu0 0.0
    %1310 = vmatprep.subr.mxu0 0.0
    %1311 = vmatpush1.xpose.msra.mxu0 0.0
    %1312 = vmatprep.subr.mxu0 0.0
    %1313 = vmatpush1.xpose.msra.mxu0 0.0
    %1314 = vmatprep.subr.mxu0 0.0
    %1315 = vmatpush1.xpose.msra.mxu0 0.0
    %1316 = vmatprep.subr.mxu0 0.0
    %1317 = vmatpush1.xpose.msra.mxu0 0.0
    %1318 = vmatprep.subr.mxu0 0.0
    %1319 = vmatpush1.xpose.msra.mxu0 0.0
    %1320 = vmatprep.subr.mxu0 0.0
    %1321 = vmatpush1.xpose.msra.mxu0 0.0
    %1322 = vmatprep.subr.mxu0 0.0
    %1323 = vmatpush1.xpose.msra.mxu0 0.0
    %1324 = vmatprep.subr.mxu0 0.0
    %1325 = vmatpush1.xpose.msra.mxu0 0.0
    %1326 = vmatprep.subr.mxu0 0.0
    %1327 = vmatpush1.xpose.msra.mxu0 0.0
    %1328 = vmatprep.subr.mxu0 0.0
    %1329 = vmatpush1.xpose.msra.mxu0 0.0
    %1330 = vmatprep.subr.mxu0 0.0
    %1331 = vmatpush1.xpose.msra.mxu0 0.0
    %1332 = vmatprep.subr.mxu0 0.0
    %1333 = vmatpush1.xpose.msra.mxu0 0.0
    %1334 = vmatprep.subr.mxu0 0.0
    %1335 = vmatpush1.xpose.msra.mxu0 0.0
    %1336 = vmatprep.subr.mxu0 0.0
    %1337 = vmatpush1.xpose.msra.mxu0 0.0
    %1338 = vmatprep.subr.mxu0 0.0
    %1339 = vmatpush1.xpose.msra.mxu0 0.0
    %1340 = vmatprep.subr.mxu0 0.0
    %1341 = vmatpush1.xpose.msra.mxu0 0.0
    %1342 = vmatprep.subr.mxu0 0.0
    %1343 = vmatpush1.xpose.msra.mxu0 0.0
    %1344 = vmatprep.subr.mxu0 0.0
    %1345 = vmatpush1.xpose.msra.mxu0 0.0
    %1346 = vmatprep.subr.mxu0 0.0
    %1347 = vmatpush1.xpose.msra.mxu0 0.0
    %1348 = vmatprep.subr.mxu0 0.0
    %1349 = vmatpush1.xpose.msra.mxu0 0.0
    %1350 = vmatprep.subr.mxu0 0.0
    %1351 = vmatpush1.xpose.msra.mxu0 0.0
    %1352 = vmatprep.subr.mxu0 0.0
    %1353 = vmatpush1.xpose.msra.mxu0 0.0
    %1354 = vmatprep.subr.mxu0 0.0
    %1355 = vmatpush1.xpose.msra.mxu0 0.0
    %1356 = vmatprep.subr.mxu0 0.0
    %1357 = vmatpush1.xpose.msra.mxu0 0.0
    %1358 = vmatprep.subr.mxu0 0.0
    %1359 = vmatpush1.xpose.msra.mxu0 0.0
    %1360 = vmatprep.subr.mxu0 0.0
    %1361 = vmatpush1.xpose.msra.mxu0 0.0
    %1362 = vmatprep.subr.mxu0 0.0
    %1363 = vmatpush1.xpose.msra.mxu0 0.0
    %1364 = vmatprep.subr.mxu0 0.0
    %1365 = vmatpush1.xpose.msra.mxu0 0.0
    %1366 = vmatprep.subr.mxu0 0.0
    %1367 = vmatpush1.xpose.msra.mxu0 0.0
    %1368 = vmatprep.mubr.f32.mxu0 0.0
    %1369 = vmatmul.mubr.f32.gmra.mrb[0].mxu0 %v253
    %v1370 = vpop.f32.mrb[0].mxu0
    %v1371 = vadd.f32 %v154, %v1370
    %v1372 = vpop.f32.mrb[0].mxu0
    %1373 = vdwg.mxu0
    %v1374 = vsel %vm327, %v1296, -inf
    %1375 = vmax.xlane.f32.xlu0 %v1374
    %v1376 = vpop.xlane.xlu0 %1375
    %v1377 = vsel %vm327, %v1371, -inf
    %1378 = vmax.xlane.f32.xlu0 %v1377
    %v1379 = vpop.xlane.xlu0 %1378
    %v1380 = vsub.f32 %v1296, %v1376
    %v1381 = vsub.f32 %v1371, %v1379
    %v1382 = vmul.f32 %v1380, 1.442695
    %v1383 = vpow.pop %v1382
    %v1384 = vmul.f32 %v1381, 1.442695
    %v1385 = vpow.pop %v1384
    %v1386 = vsel %vm327, %v1383, 0.0
    %1387 = vadd.xlane.f32.xlu0 %v1386
    %v1388 = vpop.xlane.xlu0 %1387
    %v1389 = vsel %vm327, %v1385, 0.0
    %1390 = vadd.xlane.f32.xlu0 %v1389
    %v1391 = vpop.xlane.xlu0 %1390
    %v1392 = vrcp.pop %v1388
    %v1393 = vrcp.pop %v1391
    %v1394 = vmul.f32 %v1388, %v1392
    %v1395 = vmul.f32 %v1391, %v1393
    %v1396 = vsub.f32 2.0, %v1394
    %v1397 = vsub.f32 2.0, %v1395
    %v1398 = vmul.f32 %v1392, %v1396
    %v1399 = vmul.f32 %v1393, %v1397
    %v1400 = vmul.f32 %v1383, %v1398
    %v1401 = vmul.f32 %v1385, %v1399
    %1403 = vrot.lane.b32.xlu0 %v1222, 64
    %v1404 = vpop.permute.xlu0 %1403
    %v1407 = vsel %vm327, %v1400, 0
    %1409 = vmatprep.subr.mxu0 0.0
    %1410 = vmatpush1.msra.mxu0 %v1404
    %1411 = vmatprep.subr.mxu0 0.0
    %1412 = vmatpush1.msra.mxu0 0.0
    %1413 = vmatprep.subr.mxu0 0.0
    %1414 = vmatpush1.msra.mxu0 0.0
    %1415 = vmatprep.subr.mxu0 0.0
    %1416 = vmatpush1.msra.mxu0 0.0
    %1417 = vmatprep.subr.mxu0 0.0
    %1418 = vmatpush1.msra.mxu0 0.0
    %1419 = vmatprep.subr.mxu0 0.0
    %1420 = vmatpush1.msra.mxu0 0.0
    %1421 = vmatprep.subr.mxu0 0.0
    %1422 = vmatpush1.msra.mxu0 0.0
    %1423 = vmatprep.subr.mxu0 0.0
    %1424 = vmatpush1.msra.mxu0 0.0
    %1425 = vmatprep.subr.mxu0 0.0
    %1426 = vmatpush1.msra.mxu0 0.0
    %1427 = vmatprep.subr.mxu0 0.0
    %1428 = vmatpush1.msra.mxu0 0.0
    %1429 = vmatprep.subr.mxu0 0.0
    %1430 = vmatpush1.msra.mxu0 0.0
    %1431 = vmatprep.subr.mxu0 0.0
    %1432 = vmatpush1.msra.mxu0 0.0
    %1433 = vmatprep.subr.mxu0 0.0
    %1434 = vmatpush1.msra.mxu0 0.0
    %1435 = vmatprep.subr.mxu0 0.0
    %1436 = vmatpush1.msra.mxu0 0.0
    %1437 = vmatprep.subr.mxu0 0.0
    %1438 = vmatpush1.msra.mxu0 0.0
    %1439 = vmatprep.subr.mxu0 0.0
    %1440 = vmatpush1.msra.mxu0 0.0
    %1441 = vmatprep.subr.mxu0 0.0
    %1442 = vmatpush1.msra.mxu0 0.0
    %1443 = vmatprep.subr.mxu0 0.0
    %1444 = vmatpush1.msra.mxu0 0.0
    %1445 = vmatprep.subr.mxu0 0.0
    %1446 = vmatpush1.msra.mxu0 0.0
    %1447 = vmatprep.subr.mxu0 0.0
    %1448 = vmatpush1.msra.mxu0 0.0
    %1449 = vmatprep.subr.mxu0 0.0
    %1450 = vmatpush1.msra.mxu0 0.0
    %1451 = vmatprep.subr.mxu0 0.0
    %1452 = vmatpush1.msra.mxu0 0.0
    %1453 = vmatprep.subr.mxu0 0.0
    %1454 = vmatpush1.msra.mxu0 0.0
    %1455 = vmatprep.subr.mxu0 0.0
    %1456 = vmatpush1.msra.mxu0 0.0
    %1457 = vmatprep.subr.mxu0 0.0
    %1458 = vmatpush1.msra.mxu0 0.0
    %1459 = vmatprep.subr.mxu0 0.0
    %1460 = vmatpush1.msra.mxu0 0.0
    %1461 = vmatprep.subr.mxu0 0.0
    %1462 = vmatpush1.msra.mxu0 0.0
    %1463 = vmatprep.subr.mxu0 0.0
    %1464 = vmatpush1.msra.mxu0 0.0
    %1465 = vmatprep.subr.mxu0 0.0
    %1466 = vmatpush1.msra.mxu0 0.0
    %1467 = vmatprep.subr.mxu0 0.0
    %1468 = vmatpush1.msra.mxu0 0.0
    %1469 = vmatprep.subr.mxu0 0.0
    %1470 = vmatpush1.msra.mxu0 0.0
    %1471 = vmatprep.subr.mxu0 0.0
    %1472 = vmatpush1.msra.mxu0 0.0
    %1473 = vmatprep.mubr.f32.mxu0 0.0
    %1474 = vmatmul.mubr.f32.gmra.mrb[0].mxu0 %v1407
    %v1475 = vpop.f32.mrb[0].mxu0
    %v1476 = vadd.f32 0.0, %v1475
    %v1477 = vpop.f32.mrb[0].mxu0
    %1478 = vdwg.mxu0
    %1480 = vrot.lane.b32.xlu0 %v1223, 64
    %v1481 = vpop.permute.xlu0 %1480
    %v1484 = vsel %vm327, %v1401, 0
    %1486 = vmatprep.subr.mxu0 0.0
    %1487 = vmatpush1.msra.mxu0 %v1481
    %1488 = vmatprep.subr.mxu0 0.0
    %1489 = vmatpush1.msra.mxu0 0.0
    %1490 = vmatprep.subr.mxu0 0.0
    %1491 = vmatpush1.msra.mxu0 0.0
    %1492 = vmatprep.subr.mxu0 0.0
    %1493 = vmatpush1.msra.mxu0 0.0
    %1494 = vmatprep.subr.mxu0 0.0
    %1495 = vmatpush1.msra.mxu0 0.0
    %1496 = vmatprep.subr.mxu0 0.0
    %1497 = vmatpush1.msra.mxu0 0.0
    %1498 = vmatprep.subr.mxu0 0.0
    %1499 = vmatpush1.msra.mxu0 0.0
    %1500 = vmatprep.subr.mxu0 0.0
    %1501 = vmatpush1.msra.mxu0 0.0
    %1502 = vmatprep.subr.mxu0 0.0
    %1503 = vmatpush1.msra.mxu0 0.0
    %1504 = vmatprep.subr.mxu0 0.0
    %1505 = vmatpush1.msra.mxu0 0.0
    %1506 = vmatprep.subr.mxu0 0.0
    %1507 = vmatpush1.msra.mxu0 0.0
    %1508 = vmatprep.subr.mxu0 0.0
    %1509 = vmatpush1.msra.mxu0 0.0
    %1510 = vmatprep.subr.mxu0 0.0
    %1511 = vmatpush1.msra.mxu0 0.0
    %1512 = vmatprep.subr.mxu0 0.0
    %1513 = vmatpush1.msra.mxu0 0.0
    %1514 = vmatprep.subr.mxu0 0.0
    %1515 = vmatpush1.msra.mxu0 0.0
    %1516 = vmatprep.subr.mxu0 0.0
    %1517 = vmatpush1.msra.mxu0 0.0
    %1518 = vmatprep.subr.mxu0 0.0
    %1519 = vmatpush1.msra.mxu0 0.0
    %1520 = vmatprep.subr.mxu0 0.0
    %1521 = vmatpush1.msra.mxu0 0.0
    %1522 = vmatprep.subr.mxu0 0.0
    %1523 = vmatpush1.msra.mxu0 0.0
    %1524 = vmatprep.subr.mxu0 0.0
    %1525 = vmatpush1.msra.mxu0 0.0
    %1526 = vmatprep.subr.mxu0 0.0
    %1527 = vmatpush1.msra.mxu0 0.0
    %1528 = vmatprep.subr.mxu0 0.0
    %1529 = vmatpush1.msra.mxu0 0.0
    %1530 = vmatprep.subr.mxu0 0.0
    %1531 = vmatpush1.msra.mxu0 0.0
    %1532 = vmatprep.subr.mxu0 0.0
    %1533 = vmatpush1.msra.mxu0 0.0
    %1534 = vmatprep.subr.mxu0 0.0
    %1535 = vmatpush1.msra.mxu0 0.0
    %1536 = vmatprep.subr.mxu0 0.0
    %1537 = vmatpush1.msra.mxu0 0.0
    %1538 = vmatprep.subr.mxu0 0.0
    %1539 = vmatpush1.msra.mxu0 0.0
    %1540 = vmatprep.subr.mxu0 0.0
    %1541 = vmatpush1.msra.mxu0 0.0
    %1542 = vmatprep.subr.mxu0 0.0
    %1543 = vmatpush1.msra.mxu0 0.0
    %1544 = vmatprep.subr.mxu0 0.0
    %1545 = vmatpush1.msra.mxu0 0.0
    %1546 = vmatprep.subr.mxu0 0.0
    %1547 = vmatpush1.msra.mxu0 0.0
    %1548 = vmatprep.subr.mxu0 0.0
    %1549 = vmatpush1.msra.mxu0 0.0
    %1550 = vmatprep.mubr.f32.mxu0 0.0
    %1551 = vmatmul.mubr.f32.gmra.mrb[0].mxu0 %v1484
    %v1552 = vpop.f32.mrb[0].mxu0
    %v1553 = vadd.f32 0.0, %v1552
    %v1554 = vpop.f32.mrb[0].mxu0
    %1555 = vdwg.mxu0
    %v1556 = vadd.f32 %v1206, %v1476
    %v1557 = vadd.f32 %v1207, %v1553
    %v1558 = vld [vmem:[#allocation7] sm:$0xff]
    %v1559 = vld [vmem:[#allocation7 + $0x8] sm:$0xff]
    %v1560 = vld [vmem:[#allocation7 + $0x10] sm:$0xff]
    %v1561 = vld [vmem:[#allocation7 + $0x18] sm:$0xff]
    %v1562 = vld [vmem:[%s3] sm:$0x1]
    %v1564 = vlaneseq
    %v1565 = vshrl.u32 %v1564, 7
    %v1566 = vsub.s32 0, %v1565
    %v1567 = vrot.slane %v1562, %v1566
    %v1570 = vsel %vm65, %v1556, 0
    %v1573 = vsel %vm65, %v1557, 0
    %1575 = vmatprep.subr.mxu0 0.0
    %1576 = vmatpush1.msra.mxu0 %v1558
    %1577 = vmatprep.subr.mxu0 0.0
    %1578 = vmatpush1.msra.mxu0 %v1559
    %1579 = vmatprep.subr.mxu0 0.0
    %1580 = vmatpush1.msra.mxu0 %v1560
    %1581 = vmatprep.subr.mxu0 0.0
    %1582 = vmatpush1.msra.mxu0 %v1561
    %1583 = vmatprep.subr.mxu0 0.0
    %1584 = vmatpush1.msra.mxu0 0.0
    %1585 = vmatprep.subr.mxu0 0.0
    %1586 = vmatpush1.msra.mxu0 0.0
    %1587 = vmatprep.subr.mxu0 0.0
    %1588 = vmatpush1.msra.mxu0 0.0
    %1589 = vmatprep.subr.mxu0 0.0
    %1590 = vmatpush1.msra.mxu0 0.0
    %1591 = vmatprep.subr.mxu0 0.0
    %1592 = vmatpush1.msra.mxu0 0.0
    %1593 = vmatprep.subr.mxu0 0.0
    %1594 = vmatpush1.msra.mxu0 0.0
    %1595 = vmatprep.subr.mxu0 0.0
    %1596 = vmatpush1.msra.mxu0 0.0
    %1597 = vmatprep.subr.mxu0 0.0
    %1598 = vmatpush1.msra.mxu0 0.0
    %1599 = vmatprep.subr.mxu0 0.0
    %1600 = vmatpush1.msra.mxu0 0.0
    %1601 = vmatprep.subr.mxu0 0.0
    %1602 = vmatpush1.msra.mxu0 0.0
    %1603 = vmatprep.subr.mxu0 0.0
    %1604 = vmatpush1.msra.mxu0 0.0
    %1605 = vmatprep.subr.mxu0 0.0
    %1606 = vmatpush1.msra.mxu0 0.0
    %1607 = vmatprep.subr.mxu0 0.0
    %1608 = vmatpush1.msra.mxu0 0.0
    %1609 = vmatprep.subr.mxu0 0.0
    %1610 = vmatpush1.msra.mxu0 0.0
    %1611 = vmatprep.subr.mxu0 0.0
    %1612 = vmatpush1.msra.mxu0 0.0
    %1613 = vmatprep.subr.mxu0 0.0
    %1614 = vmatpush1.msra.mxu0 0.0
    %1615 = vmatprep.subr.mxu0 0.0
    %1616 = vmatpush1.msra.mxu0 0.0
    %1617 = vmatprep.subr.mxu0 0.0
    %1618 = vmatpush1.msra.mxu0 0.0
    %1619 = vmatprep.subr.mxu0 0.0
    %1620 = vmatpush1.msra.mxu0 0.0
    %1621 = vmatprep.subr.mxu0 0.0
    %1622 = vmatpush1.msra.mxu0 0.0
    %1623 = vmatprep.subr.mxu0 0.0
    %1624 = vmatpush1.msra.mxu0 0.0
    %1625 = vmatprep.subr.mxu0 0.0
    %1626 = vmatpush1.msra.mxu0 0.0
    %1627 = vmatprep.subr.mxu0 0.0
    %1628 = vmatpush1.msra.mxu0 0.0
    %1629 = vmatprep.subr.mxu0 0.0
    %1630 = vmatpush1.msra.mxu0 0.0
    %1631 = vmatprep.subr.mxu0 0.0
    %1632 = vmatpush1.msra.mxu0 0.0
    %1633 = vmatprep.subr.mxu0 0.0
    %1634 = vmatpush1.msra.mxu0 0.0
    %1635 = vmatprep.subr.mxu0 0.0
    %1636 = vmatpush1.msra.mxu0 0.0
    %1637 = vmatprep.subr.mxu0 0.0
    %1638 = vmatpush1.msra.mxu0 0.0
    %1639 = vmatprep.mubr.f32.mxu0 0.0
    %1640 = vmatmul.mubr.f32.gmra.mrb[0].mxu0 %v1570
    %v1641 = vpop.f32.mrb[0].mxu0
    %v1642 = vadd.f32 %v1567, %v1641
    %v1643 = vpop.f32.mrb[0].mxu0
    %1644 = vmatprep.mubr.f32.mxu0 0.0
    %1645 = vmatmul.mubr.f32.gmra.mrb[0].mxu0 %v1573
    %v1646 = vpop.f32.mrb[0].mxu0
    %v1647 = vadd.f32 %v1567, %v1646
    %v1648 = vpop.f32.mrb[0].mxu0
    %1649 = vdwg.mxu0
    %1650 = vst.msk [vmem:[#allocation8] sm:$0xff] %vm65, %v1642
    %1651 = vst.msk [vmem:[#allocation8 + $0x8] sm:$0xff] %vm65, %v1647
    // Predicated region
    $region30: #{tpu_custom_call.1} parent=1 // pred_check
      _
    $region31: #{tpu_custom_call.1} parent=1 // pred_check_branch
      %1653 = sbr.rel (0) target = $region33
    $region32: #{tpu_custom_call.1} parent=1 // pred_region
      %s1655 = ssub.s32 256, 256
      %1656 = vsyncadd [#allocation4], %s1655
      %s1657 = sshll.u32 [#allocation8], 4
      %s1658 = int_to_ptr.vmem [resolvable:$true] %s1657
      %1663 = dma.vmem_to_hbm [thread:$0]  %s1658, 256, %s4, [#allocation4], 128, 128, 8
    $region33: #{tpu_custom_call.1} parent=1 // pred_fallthru
      _
    // Predicated region
    $region34: #{tpu_custom_call.1} parent=1 // pred_check
      _
    $region35: #{tpu_custom_call.1} parent=1 // pred_check_branch
      %1665 = sbr.rel (0) target = $region37
    $region36: #{tpu_custom_call.1} parent=1 // pred_region
      %1666 = dma.done [#allocation4], 256
    $region37: #{tpu_custom_call.1} parent=1 // pred_fallthru
      _
    %1667 = vsyncpa [#allocation3], 1
    %1668 = vsyncpa [#allocation6], 1
    %1669 = vsyncpa [#allocation4], 1

</llo_original>
